<compile_context>
chip_gen: v6e
topology: v6e:2x2x1
jax: 0.10.0
libtpu: 0.0.40
codegen_flags: <defaults>
</compile_context>

<pallas_src>
import jax
import jax.numpy as jnp
from jax.experimental import pallas as pl
from jax.experimental.pallas import tpu as pltpu

EMBED_DIM = 128       # embedding_dim in the PyTorch module
HIDDEN_DIM = 256      # hidden_dim in the PyTorch module
N_DEP, N_SID, N_EID = 144, 1015, 1015
# table row counts padded to lane/MXU friendly sizes (extra rows are zero and
# are never selected, so semantics are unchanged)
DEP_PAD, SID_PAD, EID_PAD = 256, 1024, 1024


def _attr_kernel(attr_ref, dep_tab_ref, sid_tab_ref, eid_tab_ref,
                 w2_ref, misc_ref, out_ref):
    # attr_ref: (TB, 8) f32 -- cols: 0=dep idx, 1:3=continuous, 3=sid, 4=eid, 5:8=pad
    # misc_ref: (8, 128) f32 -- row 0/1 = wide_w rows, row 2 = fc1_b,
    #                           row 3 = wide_b + fc2_b (pre-summed output bias)
    a = attr_ref[...]
    tb = a.shape[0]

    # ---- wide path: Linear(2 -> 128) on the VPU (a K=2 MXU matmul wastes the
    #      whole systolic K tile).  Broadcast-multiply-add, f32.
    wide = a[:, 1:2] * misc_ref[0:1, :] + a[:, 2:3] * misc_ref[1:2, :]   # (TB, 128)

    # ---- deep path: fused one-hot lookup of the pre-folded (emb @ fc1_w) tables.
    #      float->int truncation matches PyTorch .long() for the non-negative ids.
    def lookup(col, n_pad, tab_ref):
        idx = a[:, col:col + 1].astype(jnp.int32)                         # (TB, 1)
        iota = jax.lax.broadcasted_iota(jnp.int32, (tb, n_pad), 1)        # (TB, n)
        onehot = (iota == idx).astype(jnp.bfloat16)                       # exact 0/1
        return jnp.dot(onehot, tab_ref[...],
                       preferred_element_type=jnp.float32)                # (TB, 128)

    h = lookup(0, DEP_PAD, dep_tab_ref)
    h = h + lookup(3, SID_PAD, sid_tab_ref)
    h = h + lookup(4, EID_PAD, eid_tab_ref)
    h = h + misc_ref[2:3, :]                       # fc1 bias
    h = jnp.maximum(h, 0.0)                        # ReLU

    deep = jnp.dot(h.astype(jnp.bfloat16), w2_ref[...],
                   preferred_element_type=jnp.float32)

    # + (wide_b + fc2_b), pre-summed in misc row 3
    out_ref[...] = (wide + deep + misc_ref[3:4, :]).astype(out_ref.dtype)


def init_params(key):
    ks = jax.random.split(key, 9)
    s = 0.02
    return {
        # Linear weights stored pre-transposed: [in, out]
        "wide_w": s * jax.random.normal(ks[0], (2, EMBED_DIM), jnp.float32),
        "wide_b": s * jax.random.normal(ks[1], (EMBED_DIM,), jnp.float32),
        "dep_emb": s * jax.random.normal(ks[2], (N_DEP, HIDDEN_DIM), jnp.float32),
        "sid_emb": s * jax.random.normal(ks[3], (N_SID, HIDDEN_DIM), jnp.float32),
        "eid_emb": s * jax.random.normal(ks[4], (N_EID, HIDDEN_DIM), jnp.float32),
        "fc1_w": s * jax.random.normal(ks[5], (3 * HIDDEN_DIM, EMBED_DIM), jnp.float32),
        "fc1_b": s * jax.random.normal(ks[6], (EMBED_DIM,), jnp.float32),
        "fc2_w": s * jax.random.normal(ks[7], (EMBED_DIM, EMBED_DIM), jnp.float32),
        "fc2_b": s * jax.random.normal(ks[8], (EMBED_DIM,), jnp.float32),
    }


def prepare_kernel_params(p):
    """One-time constant folding of AttrBlock parameters into kernel operands.

    Because the embedding lookup feeds deep_fc1 with no nonlinearity in between,
    gather(emb)[dep] @ W1_block == gather(emb @ W1_block)[dep]; folding once here
    preserves the module's forward-pass semantics exactly (up to float rounding).
    """
    f32, bf16 = jnp.float32, jnp.bfloat16
    w1a = p["fc1_w"][0 * HIDDEN_DIM:1 * HIDDEN_DIM]
    w1b = p["fc1_w"][1 * HIDDEN_DIM:2 * HIDDEN_DIM]
    w1c = p["fc1_w"][2 * HIDDEN_DIM:3 * HIDDEN_DIM]

    def fold(emb, w, n_pad):
        tab = jnp.zeros((n_pad, EMBED_DIM), f32).at[: emb.shape[0]].set(emb @ w)
        return tab.astype(bf16)

    misc = jnp.zeros((8, EMBED_DIM), f32)
    misc = misc.at[0].set(p["wide_w"][0])
    misc = misc.at[1].set(p["wide_w"][1])
    misc = misc.at[2].set(p["fc1_b"])
    misc = misc.at[3].set(p["wide_b"] + p["fc2_b"])    # fused output bias

    return {
        "dep_tab": fold(p["dep_emb"], w1a, DEP_PAD),
        "sid_tab": fold(p["sid_emb"], w1b, SID_PAD),
        "eid_tab": fold(p["eid_emb"], w1c, EID_PAD),
        "fc2_w": p["fc2_w"].astype(bf16),
        "misc": misc,
    }


def _round_up(x, m):
    return ((x + m - 1) // m) * m


def attr_block_forward(attr, kparams, *, tb=512):
    """attr: [B, 5] f32 (dep, cont0, cont1, sid, eid) -> [B, 128] f32."""
    B = attr.shape[0]
    TB = min(tb, _round_up(B, 8))            # small batches: single small tile
    Bp = _round_up(B, TB)                    # pad batch to a multiple of the tile

    # pad per-row features to (Bp, 8): lane-friendly, one DMA stream per tile
    attr_p = jnp.zeros((Bp, 8), jnp.float32).at[:B, :5].set(attr.astype(jnp.float32))

    row_spec = lambda shape: pl.BlockSpec(shape, lambda i: (i, 0))
    res_spec = lambda shape: pl.BlockSpec(shape, lambda i: (0, 0))   # resident in VMEM

    out = pl.pallas_call(
        _attr_kernel,
        out_shape=jax.ShapeDtypeStruct((Bp, EMBED_DIM), jnp.float32),
        grid=(Bp // TB,),
        in_specs=[
            row_spec((TB, 8)),
            res_spec((DEP_PAD, EMBED_DIM)),
            res_spec((SID_PAD, EMBED_DIM)),
            res_spec((EID_PAD, EMBED_DIM)),
            res_spec((EMBED_DIM, EMBED_DIM)),
            res_spec((8, EMBED_DIM)),
        ],
        out_specs=row_spec((TB, EMBED_DIM)),
        compiler_params=pltpu.CompilerParams(
            dimension_semantics=("parallel",),
            vmem_limit_bytes=32 * 1024 * 1024,
        ),
    )(attr_p, kparams["dep_tab"], kparams["sid_tab"], kparams["eid_tab"],
      kparams["fc2_w"], kparams["misc"])
    return out[:B]


def attr_block_reference(attr, p):
    """Pure-JAX f32 reference following the original PyTorch formulation."""
    cont = attr[:, 1:3]
    dep = attr[:, 0].astype(jnp.int32)
    sid = attr[:, 3].astype(jnp.int32)
    eid = attr[:, 4].astype(jnp.int32)
    wide = cont @ p["wide_w"] + p["wide_b"]
    cat = jnp.concatenate(
        [p["dep_emb"][dep], p["sid_emb"][sid], p["eid_emb"][eid]], axis=1)
    h = jax.nn.relu(cat @ p["fc1_w"] + p["fc1_b"])
    deep = h @ p["fc2_w"] + p["fc2_b"]
    return wide + deep


if __name__ == "__main__":
    key = jax.random.PRNGKey(0)
    k_param, k_dep, k_sid, k_eid, k_cont = jax.random.split(key, 5)

    params = init_params(k_param)
    kparams = prepare_kernel_params(params)

    B = 8
    dep_idx = jax.random.randint(k_dep, (B,), 0, N_DEP).astype(jnp.float32)
    sid_idx = jax.random.randint(k_sid, (B,), 0, N_SID).astype(jnp.float32)
    eid_idx = jax.random.randint(k_eid, (B,), 0, N_EID).astype(jnp.float32)
    cont = jax.random.normal(k_cont, (B, 2), jnp.float32)
    # attr layout matches the PyTorch module: [dep, cont0, cont1, sid, eid]
    attr = jnp.stack(
        [dep_idx, cont[:, 0], cont[:, 1], sid_idx, eid_idx], axis=1)   # [B, 5] f32

    out = jax.block_until_ready(attr_block_forward(attr, kparams))
    ref = attr_block_reference(attr, params)

    assert out.shape == (B, EMBED_DIM)
    # bf16 tables / fc2 introduce ~1e-4-level error on ~3e-2-magnitude outputs
    assert bool(jnp.allclose(out, ref, atol=3e-3, rtol=2e-2)), "mismatch vs reference"

    print("KERNEL_OK")
</pallas_src>

<mosaic_0001>
module attributes {stable_mosaic.version = 11 : i64} {
  func.func @_attr_kernel(%arg0: i32, %arg1: memref<8x8xf32, #tpu.memory_space<vmem>>, %arg2: memref<256x128xbf16, #tpu.memory_space<vmem>>, %arg3: memref<1024x128xbf16, #tpu.memory_space<vmem>>, %arg4: memref<1024x128xbf16, #tpu.memory_space<vmem>>, %arg5: memref<128x128xbf16, #tpu.memory_space<vmem>>, %arg6: memref<8x128xf32, #tpu.memory_space<vmem>>, %arg7: memref<8x128xf32, #tpu.memory_space<vmem>>) attributes {dimension_semantics = [#tpu.dimension_semantics<parallel>], iteration_bounds = array<i64: 1>, scalar_prefetch = 0 : i64, scratch_operands = 0 : i64, tpu.core_type = #tpu.core_type<tc>, window_params = [{transform_indices = @transform_0, window_bounds = array<i64: 8, 8>}, {pipeline_mode = #tpu.pipeline_mode<synchronous>, transform_indices = @transform_1, window_bounds = array<i64: 256, 128>}, {pipeline_mode = #tpu.pipeline_mode<synchronous>, transform_indices = @transform_2, window_bounds = array<i64: 1024, 128>}, {pipeline_mode = #tpu.pipeline_mode<synchronous>, transform_indices = @transform_3, window_bounds = array<i64: 1024, 128>}, {pipeline_mode = #tpu.pipeline_mode<synchronous>, transform_indices = @transform_4, window_bounds = array<i64: 128, 128>}, {pipeline_mode = #tpu.pipeline_mode<synchronous>, transform_indices = @transform_5, window_bounds = array<i64: 8, 128>}, {transform_indices = @transform_6, window_bounds = array<i64: 8, 128>}]} {
    %c0 = arith.constant 0 : index
    %c0_0 = arith.constant 0 : index
    %0 = vector.load %arg1[%c0, %c0_0] : memref<8x8xf32, #tpu.memory_space<vmem>>, vector<8x8xf32>
    %1 = vector.extract_strided_slice %0 {offsets = [0, 1], sizes = [8, 1], strides = [1, 1]} : vector<8x8xf32> to vector<8x1xf32>
    %c0_1 = arith.constant 0 : index
    %c0_2 = arith.constant 0 : index
    %2 = vector.load %arg6[%c0_1, %c0_2] : memref<8x128xf32, #tpu.memory_space<vmem>>, vector<1x128xf32>
    %3 = vector.broadcast %1 : vector<8x1xf32> to vector<8x128xf32>
    %4 = vector.broadcast %2 : vector<1x128xf32> to vector<8x128xf32>
    %5 = arith.mulf %3, %4 : vector<8x128xf32>
    %6 = vector.extract_strided_slice %0 {offsets = [0, 2], sizes = [8, 1], strides = [1, 1]} : vector<8x8xf32> to vector<8x1xf32>
    %c1 = arith.constant 1 : index
    %c0_3 = arith.constant 0 : index
    %7 = vector.load %arg6[%c1, %c0_3] : memref<8x128xf32, #tpu.memory_space<vmem>>, vector<1x128xf32>
    %8 = vector.broadcast %6 : vector<8x1xf32> to vector<8x128xf32>
    %9 = vector.broadcast %7 : vector<1x128xf32> to vector<8x128xf32>
    %10 = arith.mulf %8, %9 : vector<8x128xf32>
    %11 = arith.addf %5, %10 : vector<8x128xf32>
    %12 = vector.extract_strided_slice %0 {offsets = [0, 0], sizes = [8, 1], strides = [1, 1]} : vector<8x8xf32> to vector<8x1xf32>
    %13 = arith.fptosi %12 : vector<8x1xf32> to vector<8x1xi32>
    %14 = tpu.iota {dimensions = array<i32: 1>} : vector<8x256xi32>
    %15 = vector.broadcast %13 : vector<8x1xi32> to vector<8x256xi32>
    %16 = arith.cmpi eq, %14, %15 : vector<8x256xi32>
    %17 = arith.extui %16 : vector<8x256xi1> to vector<8x256xi32>
    %18 = arith.sitofp %17 : vector<8x256xi32> to vector<8x256xf32>
    %19 = arith.truncf %18 : vector<8x256xf32> to vector<8x256xbf16>
    %c0_4 = arith.constant 0 : index
    %c0_5 = arith.constant 0 : index
    %20 = vector.load %arg2[%c0_4, %c0_5] : memref<256x128xbf16, #tpu.memory_space<vmem>>, vector<256x128xbf16>
    %cst = arith.constant dense<0.000000e+00> : vector<8x128xf32>
    %21 = tpu.matmul %19, %20, %cst {dimension_numbers = #tpu.dot_dimension_numbers<[1], [0], [0], [1], [0, 0, 1, 1], [], []>} : vector<8x256xbf16>, vector<256x128xbf16>, vector<8x128xf32> -> vector<8x128xf32>
    %22 = vector.extract_strided_slice %0 {offsets = [0, 3], sizes = [8, 1], strides = [1, 1]} : vector<8x8xf32> to vector<8x1xf32>
    %23 = arith.fptosi %22 : vector<8x1xf32> to vector<8x1xi32>
    %24 = tpu.iota {dimensions = array<i32: 1>} : vector<8x1024xi32>
    %25 = vector.broadcast %23 : vector<8x1xi32> to vector<8x1024xi32>
    %26 = arith.cmpi eq, %24, %25 : vector<8x1024xi32>
    %27 = arith.extui %26 : vector<8x1024xi1> to vector<8x1024xi32>
    %28 = arith.sitofp %27 : vector<8x1024xi32> to vector<8x1024xf32>
    %29 = arith.truncf %28 : vector<8x1024xf32> to vector<8x1024xbf16>
    %c0_6 = arith.constant 0 : index
    %c0_7 = arith.constant 0 : index
    %30 = vector.load %arg3[%c0_6, %c0_7] : memref<1024x128xbf16, #tpu.memory_space<vmem>>, vector<1024x128xbf16>
    %cst_8 = arith.constant dense<0.000000e+00> : vector<8x128xf32>
    %31 = tpu.matmul %29, %30, %cst_8 {dimension_numbers = #tpu.dot_dimension_numbers<[1], [0], [0], [1], [0, 0, 1, 1], [], []>} : vector<8x1024xbf16>, vector<1024x128xbf16>, vector<8x128xf32> -> vector<8x128xf32>
    %32 = arith.addf %21, %31 : vector<8x128xf32>
    %33 = vector.extract_strided_slice %0 {offsets = [0, 4], sizes = [8, 1], strides = [1, 1]} : vector<8x8xf32> to vector<8x1xf32>
    %34 = arith.fptosi %33 : vector<8x1xf32> to vector<8x1xi32>
    %35 = tpu.iota {dimensions = array<i32: 1>} : vector<8x1024xi32>
    %36 = vector.broadcast %34 : vector<8x1xi32> to vector<8x1024xi32>
    %37 = arith.cmpi eq, %35, %36 : vector<8x1024xi32>
    %38 = arith.extui %37 : vector<8x1024xi1> to vector<8x1024xi32>
    %39 = arith.sitofp %38 : vector<8x1024xi32> to vector<8x1024xf32>
    %40 = arith.truncf %39 : vector<8x1024xf32> to vector<8x1024xbf16>
    %c0_9 = arith.constant 0 : index
    %c0_10 = arith.constant 0 : index
    %41 = vector.load %arg4[%c0_9, %c0_10] : memref<1024x128xbf16, #tpu.memory_space<vmem>>, vector<1024x128xbf16>
    %cst_11 = arith.constant dense<0.000000e+00> : vector<8x128xf32>
    %42 = tpu.matmul %40, %41, %cst_11 {dimension_numbers = #tpu.dot_dimension_numbers<[1], [0], [0], [1], [0, 0, 1, 1], [], []>} : vector<8x1024xbf16>, vector<1024x128xbf16>, vector<8x128xf32> -> vector<8x128xf32>
    %43 = arith.addf %32, %42 : vector<8x128xf32>
    %c2 = arith.constant 2 : index
    %c0_12 = arith.constant 0 : index
    %44 = vector.load %arg6[%c2, %c0_12] : memref<8x128xf32, #tpu.memory_space<vmem>>, vector<1x128xf32>
    %45 = vector.broadcast %44 : vector<1x128xf32> to vector<8x128xf32>
    %46 = arith.addf %43, %45 : vector<8x128xf32>
    %cst_13 = arith.constant 0.000000e+00 : f32
    %47 = vector.broadcast %cst_13 : f32 to vector<8x128xf32>
    %48 = arith.maximumf %46, %47 : vector<8x128xf32>
    %49 = arith.truncf %48 : vector<8x128xf32> to vector<8x128xbf16>
    %c0_14 = arith.constant 0 : index
    %c0_15 = arith.constant 0 : index
    %50 = vector.load %arg5[%c0_14, %c0_15] : memref<128x128xbf16, #tpu.memory_space<vmem>>, vector<128x128xbf16>
    %cst_16 = arith.constant dense<0.000000e+00> : vector<8x128xf32>
    %51 = tpu.matmul %49, %50, %cst_16 {dimension_numbers = #tpu.dot_dimension_numbers<[1], [0], [0], [1], [0, 0, 1, 1], [], []>} : vector<8x128xbf16>, vector<128x128xbf16>, vector<8x128xf32> -> vector<8x128xf32>
    %52 = arith.addf %11, %51 : vector<8x128xf32>
    %c3 = arith.constant 3 : index
    %c0_17 = arith.constant 0 : index
    %53 = vector.load %arg6[%c3, %c0_17] : memref<8x128xf32, #tpu.memory_space<vmem>>, vector<1x128xf32>
    %54 = vector.broadcast %53 : vector<1x128xf32> to vector<8x128xf32>
    %55 = arith.addf %52, %54 : vector<8x128xf32>
    %c0_18 = arith.constant 0 : index
    %c0_19 = arith.constant 0 : index
    %56 = vector.load %arg7[%c0_18, %c0_19] : memref<8x128xf32, #tpu.memory_space<vmem>>, vector<8x128xf32>
    tpu.vector_store %arg7[%c0_18, %c0_19], %55 {strides = array<i32>} : memref<8x128xf32, #tpu.memory_space<vmem>>, vector<8x128xf32>,
    return
  }
  func.func @transform_0(%arg0: i32) -> (i32, i32) {
    %c0_i32 = arith.constant 0 : i32
    %c0_i32_0 = arith.constant 0 : i32
    return %arg0, %c0_i32 : i32, i32
  }
  func.func @transform_1(%arg0: i32) -> (i32, i32) {
    %c0_i32 = arith.constant 0 : i32
    %c0_i32_0 = arith.constant 0 : i32
    %c0_i32_1 = arith.constant 0 : i32
    return %c0_i32, %c0_i32_0 : i32, i32
  }
  func.func @transform_2(%arg0: i32) -> (i32, i32) {
    %c0_i32 = arith.constant 0 : i32
    %c0_i32_0 = arith.constant 0 : i32
    %c0_i32_1 = arith.constant 0 : i32
    return %c0_i32, %c0_i32_0 : i32, i32
  }
  func.func @transform_3(%arg0: i32) -> (i32, i32) {
    %c0_i32 = arith.constant 0 : i32
    %c0_i32_0 = arith.constant 0 : i32
    %c0_i32_1 = arith.constant 0 : i32
    return %c0_i32, %c0_i32_0 : i32, i32
  }
  func.func @transform_4(%arg0: i32) -> (i32, i32) {
    %c0_i32 = arith.constant 0 : i32
    %c0_i32_0 = arith.constant 0 : i32
    %c0_i32_1 = arith.constant 0 : i32
    return %c0_i32, %c0_i32_0 : i32, i32
  }
  func.func @transform_5(%arg0: i32) -> (i32, i32) {
    %c0_i32 = arith.constant 0 : i32
    %c0_i32_0 = arith.constant 0 : i32
    %c0_i32_1 = arith.constant 0 : i32
    return %c0_i32, %c0_i32_0 : i32, i32
  }
  func.func @transform_6(%arg0: i32) -> (i32, i32) {
    %c0_i32 = arith.constant 0 : i32
    %c0_i32_0 = arith.constant 0 : i32
    return %arg0, %c0_i32 : i32, i32
  }
}

</mosaic_0001>

<llo_original>
// kernel: tpu_custom_call.1
$region0: #{tpu_custom_call.1}
  #allocation0 [shape = 'u32[]', space=smem, size = 0x4, offset = 0x4, fixed_abs, tag = 'smem constant byte address 0x4 - core index']
  #allocation1 [shape = 'u32[144,128]{1,0:T(1,128)}', space=vmem, size = 0x12000, scoped, tag = 'internal scratch']
  %s0 = inlined_call_operand.hbm [shape: f32[8,8], index: 0, kind: input, shape index: {}]
  %s1 = inlined_call_operand.hbm [shape: bf16[256,128], index: 1, kind: input, shape index: {}]
  %s2 = inlined_call_operand.hbm [shape: bf16[1024,128], index: 2, kind: input, shape index: {}]
  %s3 = inlined_call_operand.hbm [shape: bf16[1024,128], index: 3, kind: input, shape index: {}]
  %s4 = inlined_call_operand.hbm [shape: bf16[128,128], index: 4, kind: input, shape index: {}]
  %s5 = inlined_call_operand.vmem [shape: f32[8,128], index: 5, kind: input, shape index: {}]
  %s6 = inlined_call_operand.hbm [shape: f32[8,128], index: 6, kind: output, shape index: {}]
  %s7 = sld [smem:[#allocation0]]
  $region54: #{tpu_custom_call.1} parent=0
    _
  %s9 = ssub.s32 1, %s7
  %s10 = scalar_select 0, %s9, %s7
  $region1: #{tpu_custom_call.1} parent=0
    #allocation2 [shape = 'u8[4096]{0}', space=vmem, size = 0x1000, scoped, tag = 'input window, operand 0, single buffered']
    #allocation3 [shape = 's32[1]{0}', space=sflag, size = 0x4, scoped, tag = 'scoped memory for tpu_custom_call.1']
    #allocation4 [shape = 's32[1]{0}', space=sflag, size = 0x4, scoped, tag = 'scoped memory for tpu_custom_call.1']
    #allocation5 [shape = 'u8[65536]{0}', space=vmem, size = 0x10000, scoped, tag = 'input window, operand 1, single buffered']
    #allocation6 [shape = 's32[1]{0}', space=sflag, size = 0x4, scoped, tag = 'scoped memory for tpu_custom_call.1']
    #allocation7 [shape = 'u8[262144]{0}', space=vmem, size = 0x40000, scoped, tag = 'input window, operand 2, single buffered']
    #allocation8 [shape = 'u8[262144]{0}', space=vmem, size = 0x40000, scoped, tag = 'input window, operand 3, single buffered']
    #allocation9 [shape = 's32[1]{0}', space=sflag, size = 0x4, scoped, tag = 'scoped memory for tpu_custom_call.1']
    #allocation10 [shape = 'u8[32768]{0}', space=vmem, size = 0x8000, scoped, tag = 'input window, operand 4, single buffered']
    #allocation11 [shape = 'u8[4096]{0}', space=vmem, size = 0x1000, scoped, tag = 'output window, operand 0, single buffered']
    %11 = vsyncpa [#allocation3], 0
    %12 = vsyncpa [#allocation6], 0
    %13 = vsyncpa [#allocation9], 0
    %14 = vsyncpa [#allocation4], 0
    // Predicated region
    $region2: #{tpu_custom_call.1} parent=1 // pred_check
      _
    $region3: #{tpu_custom_call.1} parent=1 // pred_check_branch
      %16 = sbr.rel (0) target = $region5
    $region4: #{tpu_custom_call.1} parent=1 // pred_region
      %s18 = ssub.s32 128, 128
      %19 = vsyncadd [#allocation3], %s18
      %s21 = sshll.u32 [#allocation2], 4
      %s22 = int_to_ptr.vmem [resolvable:$true] %s21
      %24 = dma.hbm_to_vmem [thread:$0]  %s0, 128, %s22, [#allocation3]
    $region5: #{tpu_custom_call.1} parent=1 // pred_fallthru
      _
    // Predicated region
    $region6: #{tpu_custom_call.1} parent=1 // pred_check
      _
    $region7: #{tpu_custom_call.1} parent=1 // pred_check_branch
      %26 = sbr.rel (0) target = $region9
    $region8: #{tpu_custom_call.1} parent=1 // pred_region
      %s28 = ssub.s32 2048, 2048
      %29 = vsyncadd [#allocation6], %s28
      %s30 = sshll.u32 [#allocation5], 4
      %s31 = int_to_ptr.vmem [resolvable:$true] %s30
      %36 = dma.hbm_to_vmem [thread:$0]  %s1, 2048, %s31, [#allocation6], 64, 64, 4
    $region9: #{tpu_custom_call.1} parent=1 // pred_fallthru
      _
    // Predicated region
    $region10: #{tpu_custom_call.1} parent=1 // pred_check
      _
    $region11: #{tpu_custom_call.1} parent=1 // pred_check_branch
      %38 = sbr.rel (0) target = $region13
    $region12: #{tpu_custom_call.1} parent=1 // pred_region
      %s40 = ssub.s32 8192, 8192
      %41 = vsyncadd [#allocation6], %s40
      %s42 = sshll.u32 [#allocation7], 4
      %s43 = int_to_ptr.vmem [resolvable:$true] %s42
      %48 = dma.hbm_to_vmem [thread:$0]  %s2, 8192, %s43, [#allocation6], 64, 64, 4
    $region13: #{tpu_custom_call.1} parent=1 // pred_fallthru
      _
    // Predicated region
    $region14: #{tpu_custom_call.1} parent=1 // pred_check
      _
    $region15: #{tpu_custom_call.1} parent=1 // pred_check_branch
      %50 = sbr.rel (0) target = $region17
    $region16: #{tpu_custom_call.1} parent=1 // pred_region
      %s52 = ssub.s32 8192, 8192
      %53 = vsyncadd [#allocation9], %s52
      %s54 = sshll.u32 [#allocation8], 4
      %s55 = int_to_ptr.vmem [resolvable:$true] %s54
      %60 = dma.hbm_to_vmem [thread:$0]  %s3, 8192, %s55, [#allocation9], 64, 64, 4
    $region17: #{tpu_custom_call.1} parent=1 // pred_fallthru
      _
    // Predicated region
    $region18: #{tpu_custom_call.1} parent=1 // pred_check
      _
    $region19: #{tpu_custom_call.1} parent=1 // pred_check_branch
      %62 = sbr.rel (0) target = $region21
    $region20: #{tpu_custom_call.1} parent=1 // pred_region
      %s64 = ssub.s32 1024, 1024
      %65 = vsyncadd [#allocation9], %s64
      %s66 = sshll.u32 [#allocation10], 4
      %s67 = int_to_ptr.vmem [resolvable:$true] %s66
      %72 = dma.hbm_to_vmem [thread:$0]  %s4, 1024, %s67, [#allocation9], 64, 64, 4
    $region21: #{tpu_custom_call.1} parent=1 // pred_fallthru
      _
    // Predicated region
    $region22: #{tpu_custom_call.1} parent=1 // pred_check
      _
    $region23: #{tpu_custom_call.1} parent=1 // pred_check_branch
      %74 = sbr.rel (0) target = $region25
    $region24: #{tpu_custom_call.1} parent=1 // pred_region
      _
    $region25: #{tpu_custom_call.1} parent=1 // pred_fallthru
      _
    // Predicated region
    $region26: #{tpu_custom_call.1} parent=1 // pred_check
      _
    $region27: #{tpu_custom_call.1} parent=1 // pred_check_branch
      %76 = sbr.rel (0) target = $region29
    $region28: #{tpu_custom_call.1} parent=1 // pred_region
      %77 = dma.done [#allocation3], 128
    $region29: #{tpu_custom_call.1} parent=1 // pred_fallthru
      _
    // Predicated region
    $region30: #{tpu_custom_call.1} parent=1 // pred_check
      _
    $region31: #{tpu_custom_call.1} parent=1 // pred_check_branch
      %79 = sbr.rel (0) target = $region33
    $region32: #{tpu_custom_call.1} parent=1 // pred_region
      %80 = dma.done [#allocation6], 2048
    $region33: #{tpu_custom_call.1} parent=1 // pred_fallthru
      _
    // Predicated region
    $region34: #{tpu_custom_call.1} parent=1 // pred_check
      _
    $region35: #{tpu_custom_call.1} parent=1 // pred_check_branch
      %82 = sbr.rel (0) target = $region37
    $region36: #{tpu_custom_call.1} parent=1 // pred_region
      %83 = dma.done [#allocation6], 8192
    $region37: #{tpu_custom_call.1} parent=1 // pred_fallthru
      _
    // Predicated region
    $region38: #{tpu_custom_call.1} parent=1 // pred_check
      _
    $region39: #{tpu_custom_call.1} parent=1 // pred_check_branch
      %85 = sbr.rel (0) target = $region41
    $region40: #{tpu_custom_call.1} parent=1 // pred_region
      %86 = dma.done [#allocation9], 8192
    $region41: #{tpu_custom_call.1} parent=1 // pred_fallthru
      _
    // Predicated region
    $region42: #{tpu_custom_call.1} parent=1 // pred_check
      _
    $region43: #{tpu_custom_call.1} parent=1 // pred_check_branch
      %88 = sbr.rel (0) target = $region45
    $region44: #{tpu_custom_call.1} parent=1 // pred_region
      %89 = dma.done [#allocation9], 1024
    $region45: #{tpu_custom_call.1} parent=1 // pred_fallthru
      _
    %v91 = vld [vmem:[#allocation2] sm:$0xff]
    %v92 = vld [vmem:[%s5] sm:$0x1]
    %94 = vset.pattern.permute.xlu0 1
    %95 = vperm.xlu0 %94, %v91
    %v96 = vpop.permute.xlu0 %95
    %v98 = vlaneseq
    %v99 = vshrl.u32 %v98, 7
    %v100 = vsub.s32 0, %v99
    %v101 = vrot.slane %v92, %v100
    %v102 = vmul.f32 %v96, %v101
    %v103 = vld [vmem:[%s5 + $0x1] sm:$0x1]
    %104 = vset.pattern.permute.xlu0 2
    %105 = vperm.xlu0 %104, %v91
    %v106 = vpop.permute.xlu0 %105
    %v108 = vlaneseq
    %v109 = vshrl.u32 %v108, 7
    %v110 = vsub.s32 0, %v109
    %v111 = vrot.slane %v103, %v110
    %v112 = vmul.f32 %v106, %v111
    %v113 = vadd.f32 %v102, %v112
    %v114 = vcvt.f32.s32.to.zero.pseudo %v91
    %v115 = vlaneseq
    %v116 = vand.u32 %v115, 127
    %v117 = vadd.s32 %v116, 128
    %118 = vset.pattern.permute.xlu0 0
    %119 = vperm.xlu0 %118, %v114
    %v120 = vpop.permute.xlu0 %119
    %vm121 = vcmp.eq.s32.totalorder %v116, %v120
    %vm122 = vcmp.eq.s32.totalorder %v117, %v120
    %v123 = vsel %vm121, 1, 0
    %v124 = vsel %vm122, 1, 0
    %v125 = vcvt.s32.f32 %v123
    %v126 = vcvt.s32.f32 %v124
    %v127 = vpack.c.bf16 %v125, %v125
    %v128 = vpack.c.bf16 %v126, %v126
    %v129 = vld [vmem:[#allocation5] sm:$0xf]
    %v130 = vld [vmem:[#allocation5 + $0x4] sm:$0xf]
    %v131 = vld [vmem:[#allocation5 + $0x8] sm:$0xf]
    %v132 = vld [vmem:[#allocation5 + $0xc] sm:$0xf]
    %v133 = vld [vmem:[#allocation5 + $0x10] sm:$0xf]
    %v134 = vld [vmem:[#allocation5 + $0x14] sm:$0xf]
    %v135 = vld [vmem:[#allocation5 + $0x18] sm:$0xf]
    %v136 = vld [vmem:[#allocation5 + $0x1c] sm:$0xf]
    %v137 = vld [vmem:[#allocation5 + $0x20] sm:$0xf]
    %v138 = vld [vmem:[#allocation5 + $0x24] sm:$0xf]
    %v139 = vld [vmem:[#allocation5 + $0x28] sm:$0xf]
    %v140 = vld [vmem:[#allocation5 + $0x2c] sm:$0xf]
    %v141 = vld [vmem:[#allocation5 + $0x30] sm:$0xf]
    %v142 = vld [vmem:[#allocation5 + $0x34] sm:$0xf]
    %v143 = vld [vmem:[#allocation5 + $0x38] sm:$0xf]
    %v144 = vld [vmem:[#allocation5 + $0x3c] sm:$0xf]
    %v145 = vld [vmem:[#allocation5 + $0x40] sm:$0xf]
    %v146 = vld [vmem:[#allocation5 + $0x44] sm:$0xf]
    %v147 = vld [vmem:[#allocation5 + $0x48] sm:$0xf]
    %v148 = vld [vmem:[#allocation5 + $0x4c] sm:$0xf]
    %v149 = vld [vmem:[#allocation5 + $0x50] sm:$0xf]
    %v150 = vld [vmem:[#allocation5 + $0x54] sm:$0xf]
    %v151 = vld [vmem:[#allocation5 + $0x58] sm:$0xf]
    %v152 = vld [vmem:[#allocation5 + $0x5c] sm:$0xf]
    %v153 = vld [vmem:[#allocation5 + $0x60] sm:$0xf]
    %v154 = vld [vmem:[#allocation5 + $0x64] sm:$0xf]
    %v155 = vld [vmem:[#allocation5 + $0x68] sm:$0xf]
    %v156 = vld [vmem:[#allocation5 + $0x6c] sm:$0xf]
    %v157 = vld [vmem:[#allocation5 + $0x70] sm:$0xf]
    %v158 = vld [vmem:[#allocation5 + $0x74] sm:$0xf]
    %v159 = vld [vmem:[#allocation5 + $0x78] sm:$0xf]
    %v160 = vld [vmem:[#allocation5 + $0x7c] sm:$0xf]
    %v161 = vadd.s32 %v116, 256
    %v162 = vadd.s32 %v116, 384
    %v163 = vadd.s32 %v116, 512
    %v164 = vadd.s32 %v116, 640
    %v165 = vadd.s32 %v116, 768
    %v166 = vadd.s32 %v116, 896
    %167 = vset.pattern.permute.xlu0 3
    %168 = vperm.xlu0 %167, %v114
    %v169 = vpop.permute.xlu0 %168
    %vm170 = vcmp.eq.s32.totalorder %v116, %v169
    %vm171 = vcmp.eq.s32.totalorder %v117, %v169
    %vm172 = vcmp.eq.s32.totalorder %v161, %v169
    %vm173 = vcmp.eq.s32.totalorder %v162, %v169
    %vm174 = vcmp.eq.s32.totalorder %v163, %v169
    %vm175 = vcmp.eq.s32.totalorder %v164, %v169
    %vm176 = vcmp.eq.s32.totalorder %v165, %v169
    %vm177 = vcmp.eq.s32.totalorder %v166, %v169
    %v178 = vsel %vm170, 1, 0
    %v179 = vsel %vm171, 1, 0
    %v180 = vsel %vm172, 1, 0
    %v181 = vsel %vm173, 1, 0
    %v182 = vsel %vm174, 1, 0
    %v183 = vsel %vm175, 1, 0
    %v184 = vsel %vm176, 1, 0
    %v185 = vsel %vm177, 1, 0
    %v186 = vcvt.s32.f32 %v178
    %v187 = vcvt.s32.f32 %v179
    %v188 = vcvt.s32.f32 %v180
    %v189 = vcvt.s32.f32 %v181
    %v190 = vcvt.s32.f32 %v182
    %v191 = vcvt.s32.f32 %v183
    %v192 = vcvt.s32.f32 %v184
    %v193 = vcvt.s32.f32 %v185
    %v194 = vpack.c.bf16 %v186, %v186
    %v195 = vpack.c.bf16 %v187, %v187
    %v196 = vpack.c.bf16 %v188, %v188
    %v197 = vpack.c.bf16 %v189, %v189
    %v198 = vpack.c.bf16 %v190, %v190
    %v199 = vpack.c.bf16 %v191, %v191
    %v200 = vpack.c.bf16 %v192, %v192
    %v201 = vpack.c.bf16 %v193, %v193
    %v202 = vld [vmem:[#allocation7] sm:$0xf]
    %v203 = vld [vmem:[#allocation7 + $0x4] sm:$0xf]
    %v204 = vld [vmem:[#allocation7 + $0x8] sm:$0xf]
    %v205 = vld [vmem:[#allocation7 + $0xc] sm:$0xf]
    %v206 = vld [vmem:[#allocation7 + $0x10] sm:$0xf]
    %v207 = vld [vmem:[#allocation7 + $0x14] sm:$0xf]
    %v208 = vld [vmem:[#allocation7 + $0x18] sm:$0xf]
    %v209 = vld [vmem:[#allocation7 + $0x1c] sm:$0xf]
    %v210 = vld [vmem:[#allocation7 + $0x20] sm:$0xf]
    %v211 = vld [vmem:[#allocation7 + $0x24] sm:$0xf]
    %v212 = vld [vmem:[#allocation7 + $0x28] sm:$0xf]
    %v213 = vld [vmem:[#allocation7 + $0x2c] sm:$0xf]
    %v214 = vld [vmem:[#allocation7 + $0x30] sm:$0xf]
    %v215 = vld [vmem:[#allocation7 + $0x34] sm:$0xf]
    %v216 = vld [vmem:[#allocation7 + $0x38] sm:$0xf]
    %v217 = vld [vmem:[#allocation7 + $0x3c] sm:$0xf]
    %v218 = vld [vmem:[#allocation7 + $0x40] sm:$0xf]
    %v219 = vld [vmem:[#allocation7 + $0x44] sm:$0xf]
    %v220 = vld [vmem:[#allocation7 + $0x48] sm:$0xf]
    %v221 = vld [vmem:[#allocation7 + $0x4c] sm:$0xf]
    %v222 = vld [vmem:[#allocation7 + $0x50] sm:$0xf]
    %v223 = vld [vmem:[#allocation7 + $0x54] sm:$0xf]
    %v224 = vld [vmem:[#allocation7 + $0x58] sm:$0xf]
    %v225 = vld [vmem:[#allocation7 + $0x5c] sm:$0xf]
    %v226 = vld [vmem:[#allocation7 + $0x60] sm:$0xf]
    %v227 = vld [vmem:[#allocation7 + $0x64] sm:$0xf]
    %v228 = vld [vmem:[#allocation7 + $0x68] sm:$0xf]
    %v229 = vld [vmem:[#allocation7 + $0x6c] sm:$0xf]
    %v230 = vld [vmem:[#allocation7 + $0x70] sm:$0xf]
    %v231 = vld [vmem:[#allocation7 + $0x74] sm:$0xf]
    %v232 = vld [vmem:[#allocation7 + $0x78] sm:$0xf]
    %v233 = vld [vmem:[#allocation7 + $0x7c] sm:$0xf]
    %v234 = vld [vmem:[#allocation7 + $0x80] sm:$0xf]
    %v235 = vld [vmem:[#allocation7 + $0x84] sm:$0xf]
    %v236 = vld [vmem:[#allocation7 + $0x88] sm:$0xf]
    %v237 = vld [vmem:[#allocation7 + $0x8c] sm:$0xf]
    %v238 = vld [vmem:[#allocation7 + $0x90] sm:$0xf]
    %v239 = vld [vmem:[#allocation7 + $0x94] sm:$0xf]
    %v240 = vld [vmem:[#allocation7 + $0x98] sm:$0xf]
    %v241 = vld [vmem:[#allocation7 + $0x9c] sm:$0xf]
    %v242 = vld [vmem:[#allocation7 + $0xa0] sm:$0xf]
    %v243 = vld [vmem:[#allocation7 + $0xa4] sm:$0xf]
    %v244 = vld [vmem:[#allocation7 + $0xa8] sm:$0xf]
    %v245 = vld [vmem:[#allocation7 + $0xac] sm:$0xf]
    %v246 = vld [vmem:[#allocation7 + $0xb0] sm:$0xf]
    %v247 = vld [vmem:[#allocation7 + $0xb4] sm:$0xf]
    %v248 = vld [vmem:[#allocation7 + $0xb8] sm:$0xf]
    %v249 = vld [vmem:[#allocation7 + $0xbc] sm:$0xf]
    %v250 = vld [vmem:[#allocation7 + $0xc0] sm:$0xf]
    %v251 = vld [vmem:[#allocation7 + $0xc4] sm:$0xf]
    %v252 = vld [vmem:[#allocation7 + $0xc8] sm:$0xf]
    %v253 = vld [vmem:[#allocation7 + $0xcc] sm:$0xf]
    %v254 = vld [vmem:[#allocation7 + $0xd0] sm:$0xf]
    %v255 = vld [vmem:[#allocation7 + $0xd4] sm:$0xf]
    %v256 = vld [vmem:[#allocation7 + $0xd8] sm:$0xf]
    %v257 = vld [vmem:[#allocation7 + $0xdc] sm:$0xf]
    %v258 = vld [vmem:[#allocation7 + $0xe0] sm:$0xf]
    %v259 = vld [vmem:[#allocation7 + $0xe4] sm:$0xf]
    %v260 = vld [vmem:[#allocation7 + $0xe8] sm:$0xf]
    %v261 = vld [vmem:[#allocation7 + $0xec] sm:$0xf]
    %v262 = vld [vmem:[#allocation7 + $0xf0] sm:$0xf]
    %v263 = vld [vmem:[#allocation7 + $0xf4] sm:$0xf]
    %v264 = vld [vmem:[#allocation7 + $0xf8] sm:$0xf]
    %v265 = vld [vmem:[#allocation7 + $0xfc] sm:$0xf]
    %v266 = vld [vmem:[#allocation7 + $0x100] sm:$0xf]
    %v267 = vld [vmem:[#allocation7 + $0x104] sm:$0xf]
    %v268 = vld [vmem:[#allocation7 + $0x108] sm:$0xf]
    %v269 = vld [vmem:[#allocation7 + $0x10c] sm:$0xf]
    %v270 = vld [vmem:[#allocation7 + $0x110] sm:$0xf]
    %v271 = vld [vmem:[#allocation7 + $0x114] sm:$0xf]
    %v272 = vld [vmem:[#allocation7 + $0x118] sm:$0xf]
    %v273 = vld [vmem:[#allocation7 + $0x11c] sm:$0xf]
    %v274 = vld [vmem:[#allocation7 + $0x120] sm:$0xf]
    %v275 = vld [vmem:[#allocation7 + $0x124] sm:$0xf]
    %v276 = vld [vmem:[#allocation7 + $0x128] sm:$0xf]
    %v277 = vld [vmem:[#allocation7 + $0x12c] sm:$0xf]
    %v278 = vld [vmem:[#allocation7 + $0x130] sm:$0xf]
    %v279 = vld [vmem:[#allocation7 + $0x134] sm:$0xf]
    %v280 = vld [vmem:[#allocation7 + $0x138] sm:$0xf]
    %v281 = vld [vmem:[#allocation7 + $0x13c] sm:$0xf]
    %v282 = vld [vmem:[#allocation7 + $0x140] sm:$0xf]
    %v283 = vld [vmem:[#allocation7 + $0x144] sm:$0xf]
    %v284 = vld [vmem:[#allocation7 + $0x148] sm:$0xf]
    %v285 = vld [vmem:[#allocation7 + $0x14c] sm:$0xf]
    %v286 = vld [vmem:[#allocation7 + $0x150] sm:$0xf]
    %v287 = vld [vmem:[#allocation7 + $0x154] sm:$0xf]
    %v288 = vld [vmem:[#allocation7 + $0x158] sm:$0xf]
    %v289 = vld [vmem:[#allocation7 + $0x15c] sm:$0xf]
    %v290 = vld [vmem:[#allocation7 + $0x160] sm:$0xf]
    %v291 = vld [vmem:[#allocation7 + $0x164] sm:$0xf]
    %v292 = vld [vmem:[#allocation7 + $0x168] sm:$0xf]
    %v293 = vld [vmem:[#allocation7 + $0x16c] sm:$0xf]
    %v294 = vld [vmem:[#allocation7 + $0x170] sm:$0xf]
    %v295 = vld [vmem:[#allocation7 + $0x174] sm:$0xf]
    %v296 = vld [vmem:[#allocation7 + $0x178] sm:$0xf]
    %v297 = vld [vmem:[#allocation7 + $0x17c] sm:$0xf]
    %v298 = vld [vmem:[#allocation7 + $0x180] sm:$0xf]
    %v299 = vld [vmem:[#allocation7 + $0x184] sm:$0xf]
    %v300 = vld [vmem:[#allocation7 + $0x188] sm:$0xf]
    %v301 = vld [vmem:[#allocation7 + $0x18c] sm:$0xf]
    %v302 = vld [vmem:[#allocation7 + $0x190] sm:$0xf]
    %v303 = vld [vmem:[#allocation7 + $0x194] sm:$0xf]
    %v304 = vld [vmem:[#allocation7 + $0x198] sm:$0xf]
    %v305 = vld [vmem:[#allocation7 + $0x19c] sm:$0xf]
    %v306 = vld [vmem:[#allocation7 + $0x1a0] sm:$0xf]
    %v307 = vld [vmem:[#allocation7 + $0x1a4] sm:$0xf]
    %v308 = vld [vmem:[#allocation7 + $0x1a8] sm:$0xf]
    %v309 = vld [vmem:[#allocation7 + $0x1ac] sm:$0xf]
    %v310 = vld [vmem:[#allocation7 + $0x1b0] sm:$0xf]
    %v311 = vld [vmem:[#allocation7 + $0x1b4] sm:$0xf]
    %v312 = vld [vmem:[#allocation7 + $0x1b8] sm:$0xf]
    %v313 = vld [vmem:[#allocation7 + $0x1bc] sm:$0xf]
    %v314 = vld [vmem:[#allocation7 + $0x1c0] sm:$0xf]
    %v315 = vld [vmem:[#allocation7 + $0x1c4] sm:$0xf]
    %v316 = vld [vmem:[#allocation7 + $0x1c8] sm:$0xf]
    %v317 = vld [vmem:[#allocation7 + $0x1cc] sm:$0xf]
    %v318 = vld [vmem:[#allocation7 + $0x1d0] sm:$0xf]
    %v319 = vld [vmem:[#allocation7 + $0x1d4] sm:$0xf]
    %v320 = vld [vmem:[#allocation7 + $0x1d8] sm:$0xf]
    %v321 = vld [vmem:[#allocation7 + $0x1dc] sm:$0xf]
    %v322 = vld [vmem:[#allocation7 + $0x1e0] sm:$0xf]
    %v323 = vld [vmem:[#allocation7 + $0x1e4] sm:$0xf]
    %v324 = vld [vmem:[#allocation7 + $0x1e8] sm:$0xf]
    %v325 = vld [vmem:[#allocation7 + $0x1ec] sm:$0xf]
    %v326 = vld [vmem:[#allocation7 + $0x1f0] sm:$0xf]
    %v327 = vld [vmem:[#allocation7 + $0x1f4] sm:$0xf]
    %v328 = vld [vmem:[#allocation7 + $0x1f8] sm:$0xf]
    %v329 = vld [vmem:[#allocation7 + $0x1fc] sm:$0xf]
    %v458 = vunpack.c.l.b16 %v202
    %v459 = vunpack.c.l.b16 %v203
    %v460 = vunpack.c.l.b16 %v204
    %v461 = vunpack.c.l.b16 %v205
    %v462 = vunpack.c.l.b16 %v206
    %v463 = vunpack.c.l.b16 %v207
    %v464 = vunpack.c.l.b16 %v208
    %v465 = vunpack.c.l.b16 %v209
    %v466 = vunpack.c.l.b16 %v210
    %v467 = vunpack.c.l.b16 %v211
    %v468 = vunpack.c.l.b16 %v212
    %v469 = vunpack.c.l.b16 %v213
    %v470 = vunpack.c.l.b16 %v214
    %v471 = vunpack.c.l.b16 %v215
    %v472 = vunpack.c.l.b16 %v216
    %v473 = vunpack.c.l.b16 %v217
    %v474 = vunpack.c.l.b16 %v218
    %v475 = vunpack.c.l.b16 %v219
    %v476 = vunpack.c.l.b16 %v220
    %v477 = vunpack.c.l.b16 %v221
    %v478 = vunpack.c.l.b16 %v222
    %v479 = vunpack.c.l.b16 %v223
    %v480 = vunpack.c.l.b16 %v224
    %v481 = vunpack.c.l.b16 %v225
    %v482 = vunpack.c.l.b16 %v226
    %v483 = vunpack.c.l.b16 %v227
    %v484 = vunpack.c.l.b16 %v228
    %v485 = vunpack.c.l.b16 %v229
    %v486 = vunpack.c.l.b16 %v230
    %v487 = vunpack.c.l.b16 %v231
    %v488 = vunpack.c.l.b16 %v232
    %v489 = vunpack.c.l.b16 %v233
    %v490 = vunpack.c.l.b16 %v234
    %v491 = vunpack.c.l.b16 %v235
    %v492 = vunpack.c.l.b16 %v236
    %v493 = vunpack.c.l.b16 %v237
    %v494 = vunpack.c.l.b16 %v238
    %v495 = vunpack.c.l.b16 %v239
    %v496 = vunpack.c.l.b16 %v240
    %v497 = vunpack.c.l.b16 %v241
    %v498 = vunpack.c.l.b16 %v242
    %v499 = vunpack.c.l.b16 %v243
    %v500 = vunpack.c.l.b16 %v244
    %v501 = vunpack.c.l.b16 %v245
    %v502 = vunpack.c.l.b16 %v246
    %v503 = vunpack.c.l.b16 %v247
    %v504 = vunpack.c.l.b16 %v248
    %v505 = vunpack.c.l.b16 %v249
    %v506 = vunpack.c.l.b16 %v250
    %v507 = vunpack.c.l.b16 %v251
    %v508 = vunpack.c.l.b16 %v252
    %v509 = vunpack.c.l.b16 %v253
    %v510 = vunpack.c.l.b16 %v254
    %v511 = vunpack.c.l.b16 %v255
    %v512 = vunpack.c.l.b16 %v256
    %v513 = vunpack.c.l.b16 %v257
    %v514 = vunpack.c.l.b16 %v258
    %v515 = vunpack.c.l.b16 %v259
    %v516 = vunpack.c.l.b16 %v260
    %v517 = vunpack.c.l.b16 %v261
    %v518 = vunpack.c.l.b16 %v262
    %v519 = vunpack.c.l.b16 %v263
    %v520 = vunpack.c.l.b16 %v264
    %v521 = vunpack.c.l.b16 %v265
    %v522 = vunpack.c.l.b16 %v266
    %v523 = vunpack.c.l.b16 %v267
    %v524 = vunpack.c.l.b16 %v268
    %v525 = vunpack.c.l.b16 %v269
    %v526 = vunpack.c.l.b16 %v270
    %v527 = vunpack.c.l.b16 %v271
    %v528 = vunpack.c.l.b16 %v272
    %v529 = vunpack.c.l.b16 %v273
    %v530 = vunpack.c.l.b16 %v274
    %v531 = vunpack.c.l.b16 %v275
    %v532 = vunpack.c.l.b16 %v276
    %v533 = vunpack.c.l.b16 %v277
    %v534 = vunpack.c.l.b16 %v278
    %v535 = vunpack.c.l.b16 %v279
    %v536 = vunpack.c.l.b16 %v280
    %v537 = vunpack.c.l.b16 %v281
    %v538 = vunpack.c.l.b16 %v282
    %v539 = vunpack.c.l.b16 %v283
    %v540 = vunpack.c.l.b16 %v284
    %v541 = vunpack.c.l.b16 %v285
    %v542 = vunpack.c.l.b16 %v286
    %v543 = vunpack.c.l.b16 %v287
    %v544 = vunpack.c.l.b16 %v288
    %v545 = vunpack.c.l.b16 %v289
    %v546 = vunpack.c.l.b16 %v290
    %v547 = vunpack.c.l.b16 %v291
    %v548 = vunpack.c.l.b16 %v292
    %v549 = vunpack.c.l.b16 %v293
    %v550 = vunpack.c.l.b16 %v294
    %v551 = vunpack.c.l.b16 %v295
    %v552 = vunpack.c.l.b16 %v296
    %v553 = vunpack.c.l.b16 %v297
    %v554 = vunpack.c.l.b16 %v298
    %v555 = vunpack.c.l.b16 %v299
    %v556 = vunpack.c.l.b16 %v300
    %v557 = vunpack.c.l.b16 %v301
    %v558 = vunpack.c.l.b16 %v302
    %v559 = vunpack.c.l.b16 %v303
    %v560 = vunpack.c.l.b16 %v304
    %v561 = vunpack.c.l.b16 %v305
    %v562 = vunpack.c.l.b16 %v306
    %v563 = vunpack.c.l.b16 %v307
    %v564 = vunpack.c.l.b16 %v308
    %v565 = vunpack.c.l.b16 %v309
    %v566 = vunpack.c.l.b16 %v310
    %v567 = vunpack.c.l.b16 %v311
    %v568 = vunpack.c.l.b16 %v312
    %v569 = vunpack.c.l.b16 %v313
    %v570 = vunpack.c.l.b16 %v314
    %v571 = vunpack.c.l.b16 %v315
    %v572 = vunpack.c.l.b16 %v316
    %v573 = vunpack.c.l.b16 %v317
    %v574 = vunpack.c.l.b16 %v318
    %v575 = vunpack.c.l.b16 %v319
    %v576 = vunpack.c.l.b16 %v320
    %v577 = vunpack.c.l.b16 %v321
    %v578 = vunpack.c.l.b16 %v322
    %v579 = vunpack.c.l.b16 %v323
    %v580 = vunpack.c.l.b16 %v324
    %v581 = vunpack.c.l.b16 %v325
    %v582 = vunpack.c.l.b16 %v326
    %v583 = vunpack.c.l.b16 %v327
    %v584 = vunpack.c.l.b16 %v328
    %v585 = vunpack.c.l.b16 %v329
    %v586 = vpack.c.b16 %v459, %v458
    %v587 = vpack.c.b16 %v461, %v460
    %v588 = vpack.c.b16 %v463, %v462
    %v589 = vpack.c.b16 %v465, %v464
    %v590 = vpack.c.b16 %v467, %v466
    %v591 = vpack.c.b16 %v469, %v468
    %v592 = vpack.c.b16 %v471, %v470
    %v593 = vpack.c.b16 %v473, %v472
    %v594 = vpack.c.b16 %v475, %v474
    %v595 = vpack.c.b16 %v477, %v476
    %v596 = vpack.c.b16 %v479, %v478
    %v597 = vpack.c.b16 %v481, %v480
    %v598 = vpack.c.b16 %v483, %v482
    %v599 = vpack.c.b16 %v485, %v484
    %v600 = vpack.c.b16 %v487, %v486
    %v601 = vpack.c.b16 %v489, %v488
    %v602 = vpack.c.b16 %v491, %v490
    %v603 = vpack.c.b16 %v493, %v492
    %v604 = vpack.c.b16 %v495, %v494
    %v605 = vpack.c.b16 %v497, %v496
    %v606 = vpack.c.b16 %v499, %v498
    %v607 = vpack.c.b16 %v501, %v500
    %v608 = vpack.c.b16 %v503, %v502
    %v609 = vpack.c.b16 %v505, %v504
    %v610 = vpack.c.b16 %v507, %v506
    %v611 = vpack.c.b16 %v509, %v508
    %v612 = vpack.c.b16 %v511, %v510
    %v613 = vpack.c.b16 %v513, %v512
    %v614 = vpack.c.b16 %v515, %v514
    %v615 = vpack.c.b16 %v517, %v516
    %v616 = vpack.c.b16 %v519, %v518
    %v617 = vpack.c.b16 %v521, %v520
    %v618 = vpack.c.b16 %v523, %v522
    %v619 = vpack.c.b16 %v525, %v524
    %v620 = vpack.c.b16 %v527, %v526
    %v621 = vpack.c.b16 %v529, %v528
    %v622 = vpack.c.b16 %v531, %v530
    %v623 = vpack.c.b16 %v533, %v532
    %v624 = vpack.c.b16 %v535, %v534
    %v625 = vpack.c.b16 %v537, %v536
    %v626 = vpack.c.b16 %v539, %v538
    %v627 = vpack.c.b16 %v541, %v540
    %v628 = vpack.c.b16 %v543, %v542
    %v629 = vpack.c.b16 %v545, %v544
    %v630 = vpack.c.b16 %v547, %v546
    %v631 = vpack.c.b16 %v549, %v548
    %v632 = vpack.c.b16 %v551, %v550
    %v633 = vpack.c.b16 %v553, %v552
    %v634 = vpack.c.b16 %v555, %v554
    %v635 = vpack.c.b16 %v557, %v556
    %v636 = vpack.c.b16 %v559, %v558
    %v637 = vpack.c.b16 %v561, %v560
    %v638 = vpack.c.b16 %v563, %v562
    %v639 = vpack.c.b16 %v565, %v564
    %v640 = vpack.c.b16 %v567, %v566
    %v641 = vpack.c.b16 %v569, %v568
    %v642 = vpack.c.b16 %v571, %v570
    %v643 = vpack.c.b16 %v573, %v572
    %v644 = vpack.c.b16 %v575, %v574
    %v645 = vpack.c.b16 %v577, %v576
    %v646 = vpack.c.b16 %v579, %v578
    %v647 = vpack.c.b16 %v581, %v580
    %v648 = vpack.c.b16 %v583, %v582
    %v649 = vpack.c.b16 %v585, %v584
    %714 = vmatprep.subr.bf16.mxu0 0
    %715 = vmatpush1.bf16.msra.mxu0 %v593
    %716 = vmatprep.subr.bf16.mxu0 0
    %717 = vmatpush1.bf16.msra.mxu0 %v592
    %718 = vmatprep.subr.bf16.mxu0 0
    %719 = vmatpush1.bf16.msra.mxu0 %v591
    %720 = vmatprep.subr.bf16.mxu0 0
    %721 = vmatpush1.bf16.msra.mxu0 %v590
    %722 = vmatprep.subr.bf16.mxu0 0
    %723 = vmatpush1.bf16.msra.mxu0 %v589
    %724 = vmatprep.subr.bf16.mxu0 0
    %725 = vmatpush1.bf16.msra.mxu0 %v588
    %726 = vmatprep.subr.bf16.mxu0 0
    %727 = vmatpush1.bf16.msra.mxu0 %v587
    %728 = vmatprep.subr.bf16.mxu0 0
    %729 = vmatpush1.bf16.msra.mxu0 %v586
    %730 = vmatprep.subr.bf16.mxu0 0
    %731 = vmatpush2.bf16.msra.mxu0 %v601
    %732 = vmatprep.subr.bf16.mxu0 0
    %733 = vmatpush2.bf16.msra.mxu0 %v600
    %734 = vmatprep.subr.bf16.mxu0 0
    %735 = vmatpush2.bf16.msra.mxu0 %v599
    %736 = vmatprep.subr.bf16.mxu0 0
    %737 = vmatpush2.bf16.msra.mxu0 %v598
    %738 = vmatprep.subr.bf16.mxu0 0
    %739 = vmatpush2.bf16.msra.mxu0 %v597
    %740 = vmatprep.subr.bf16.mxu0 0
    %741 = vmatpush2.bf16.msra.mxu0 %v596
    %742 = vmatprep.subr.bf16.mxu0 0
    %743 = vmatpush2.bf16.msra.mxu0 %v595
    %744 = vmatprep.subr.bf16.mxu0 0
    %745 = vmatpush2.bf16.msra.mxu0 %v594
    %746 = vmatprep.mubr.bf16.mxu0 %v195
    %747 = vmatmul.mubr.bf16.gmra.mxu0 %v194
    %v748 = vpop.f32.mrf.mxu0
    %v749 = vadd.f32 0.0, %v748
    %v750 = vpop.f32.mrf.mxu0
    %v751 = vpop.f32.mrf.mxu0
    %v752 = vpop.f32.mrf.mxu0
    %753 = vdwg.mxu0
    %754 = vmatprep.subr.bf16.mxu0 0
    %755 = vmatpush1.bf16.msra.mxu0 %v609
    %756 = vmatprep.subr.bf16.mxu0 0
    %757 = vmatpush1.bf16.msra.mxu0 %v608
    %758 = vmatprep.subr.bf16.mxu0 0
    %759 = vmatpush1.bf16.msra.mxu0 %v607
    %760 = vmatprep.subr.bf16.mxu0 0
    %761 = vmatpush1.bf16.msra.mxu0 %v606
    %762 = vmatprep.subr.bf16.mxu0 0
    %763 = vmatpush1.bf16.msra.mxu0 %v605
    %764 = vmatprep.subr.bf16.mxu0 0
    %765 = vmatpush1.bf16.msra.mxu0 %v604
    %766 = vmatprep.subr.bf16.mxu0 0
    %767 = vmatpush1.bf16.msra.mxu0 %v603
    %768 = vmatprep.subr.bf16.mxu0 0
    %769 = vmatpush1.bf16.msra.mxu0 %v602
    %770 = vmatprep.subr.bf16.mxu0 0
    %771 = vmatpush2.bf16.msra.mxu0 %v617
    %772 = vmatprep.subr.bf16.mxu0 0
    %773 = vmatpush2.bf16.msra.mxu0 %v616
    %774 = vmatprep.subr.bf16.mxu0 0
    %775 = vmatpush2.bf16.msra.mxu0 %v615
    %776 = vmatprep.subr.bf16.mxu0 0
    %777 = vmatpush2.bf16.msra.mxu0 %v614
    %778 = vmatprep.subr.bf16.mxu0 0
    %779 = vmatpush2.bf16.msra.mxu0 %v613
    %780 = vmatprep.subr.bf16.mxu0 0
    %781 = vmatpush2.bf16.msra.mxu0 %v612
    %782 = vmatprep.subr.bf16.mxu0 0
    %783 = vmatpush2.bf16.msra.mxu0 %v611
    %784 = vmatprep.subr.bf16.mxu0 0
    %785 = vmatpush2.bf16.msra.mxu0 %v610
    %786 = vmatprep.mubr.bf16.mxu0 %v197
    %787 = vmatmul.mubr.bf16.gmra.mxu0 %v196
    %v788 = vpop.f32.mrf.mxu0
    %v789 = vadd.f32 %v749, %v788
    %v790 = vpop.f32.mrf.mxu0
    %v791 = vpop.f32.mrf.mxu0
    %v792 = vpop.f32.mrf.mxu0
    %793 = vdwg.mxu0
    %794 = vmatprep.subr.bf16.mxu0 0
    %795 = vmatpush1.bf16.msra.mxu0 %v625
    %796 = vmatprep.subr.bf16.mxu0 0
    %797 = vmatpush1.bf16.msra.mxu0 %v624
    %798 = vmatprep.subr.bf16.mxu0 0
    %799 = vmatpush1.bf16.msra.mxu0 %v623
    %800 = vmatprep.subr.bf16.mxu0 0
    %801 = vmatpush1.bf16.msra.mxu0 %v622
    %802 = vmatprep.subr.bf16.mxu0 0
    %803 = vmatpush1.bf16.msra.mxu0 %v621
    %804 = vmatprep.subr.bf16.mxu0 0
    %805 = vmatpush1.bf16.msra.mxu0 %v620
    %806 = vmatprep.subr.bf16.mxu0 0
    %807 = vmatpush1.bf16.msra.mxu0 %v619
    %808 = vmatprep.subr.bf16.mxu0 0
    %809 = vmatpush1.bf16.msra.mxu0 %v618
    %810 = vmatprep.subr.bf16.mxu0 0
    %811 = vmatpush2.bf16.msra.mxu0 %v633
    %812 = vmatprep.subr.bf16.mxu0 0
    %813 = vmatpush2.bf16.msra.mxu0 %v632
    %814 = vmatprep.subr.bf16.mxu0 0
    %815 = vmatpush2.bf16.msra.mxu0 %v631
    %816 = vmatprep.subr.bf16.mxu0 0
    %817 = vmatpush2.bf16.msra.mxu0 %v630
    %818 = vmatprep.subr.bf16.mxu0 0
    %819 = vmatpush2.bf16.msra.mxu0 %v629
    %820 = vmatprep.subr.bf16.mxu0 0
    %821 = vmatpush2.bf16.msra.mxu0 %v628
    %822 = vmatprep.subr.bf16.mxu0 0
    %823 = vmatpush2.bf16.msra.mxu0 %v627
    %824 = vmatprep.subr.bf16.mxu0 0
    %825 = vmatpush2.bf16.msra.mxu0 %v626
    %826 = vmatprep.mubr.bf16.mxu0 %v199
    %827 = vmatmul.mubr.bf16.gmra.mxu0 %v198
    %v828 = vpop.f32.mrf.mxu0
    %v829 = vadd.f32 %v789, %v828
    %v830 = vpop.f32.mrf.mxu0
    %v831 = vpop.f32.mrf.mxu0
    %v832 = vpop.f32.mrf.mxu0
    %833 = vdwg.mxu0
    %834 = vmatprep.subr.bf16.mxu0 0
    %835 = vmatpush1.bf16.msra.mxu0 %v641
    %836 = vmatprep.subr.bf16.mxu0 0
    %837 = vmatpush1.bf16.msra.mxu0 %v640
    %838 = vmatprep.subr.bf16.mxu0 0
    %839 = vmatpush1.bf16.msra.mxu0 %v639
    %840 = vmatprep.subr.bf16.mxu0 0
    %841 = vmatpush1.bf16.msra.mxu0 %v638
    %842 = vmatprep.subr.bf16.mxu0 0
    %843 = vmatpush1.bf16.msra.mxu0 %v637
    %844 = vmatprep.subr.bf16.mxu0 0
    %845 = vmatpush1.bf16.msra.mxu0 %v636
    %846 = vmatprep.subr.bf16.mxu0 0
    %847 = vmatpush1.bf16.msra.mxu0 %v635
    %848 = vmatprep.subr.bf16.mxu0 0
    %849 = vmatpush1.bf16.msra.mxu0 %v634
    %850 = vmatprep.subr.bf16.mxu0 0
    %851 = vmatpush2.bf16.msra.mxu0 %v649
    %852 = vmatprep.subr.bf16.mxu0 0
    %853 = vmatpush2.bf16.msra.mxu0 %v648
    %854 = vmatprep.subr.bf16.mxu0 0
    %855 = vmatpush2.bf16.msra.mxu0 %v647
    %856 = vmatprep.subr.bf16.mxu0 0
    %857 = vmatpush2.bf16.msra.mxu0 %v646
    %858 = vmatprep.subr.bf16.mxu0 0
    %859 = vmatpush2.bf16.msra.mxu0 %v645
    %860 = vmatprep.subr.bf16.mxu0 0
    %861 = vmatpush2.bf16.msra.mxu0 %v644
    %862 = vmatprep.subr.bf16.mxu0 0
    %863 = vmatpush2.bf16.msra.mxu0 %v643
    %864 = vmatprep.subr.bf16.mxu0 0
    %865 = vmatpush2.bf16.msra.mxu0 %v642
    %866 = vmatprep.mubr.bf16.mxu0 %v201
    %867 = vmatmul.mubr.bf16.gmra.mxu0 %v200
    %v868 = vpop.f32.mrf.mxu0
    %v869 = vadd.f32 %v829, %v868
    %v870 = vpop.f32.mrf.mxu0
    %v871 = vpop.f32.mrf.mxu0
    %v872 = vpop.f32.mrf.mxu0
    %873 = vdwg.mxu0
    %v906 = vunpack.c.l.b16 %v129
    %v907 = vunpack.c.l.b16 %v130
    %v908 = vunpack.c.l.b16 %v131
    %v909 = vunpack.c.l.b16 %v132
    %v910 = vunpack.c.l.b16 %v133
    %v911 = vunpack.c.l.b16 %v134
    %v912 = vunpack.c.l.b16 %v135
    %v913 = vunpack.c.l.b16 %v136
    %v914 = vunpack.c.l.b16 %v137
    %v915 = vunpack.c.l.b16 %v138
    %v916 = vunpack.c.l.b16 %v139
    %v917 = vunpack.c.l.b16 %v140
    %v918 = vunpack.c.l.b16 %v141
    %v919 = vunpack.c.l.b16 %v142
    %v920 = vunpack.c.l.b16 %v143
    %v921 = vunpack.c.l.b16 %v144
    %v922 = vunpack.c.l.b16 %v145
    %v923 = vunpack.c.l.b16 %v146
    %v924 = vunpack.c.l.b16 %v147
    %v925 = vunpack.c.l.b16 %v148
    %v926 = vunpack.c.l.b16 %v149
    %v927 = vunpack.c.l.b16 %v150
    %v928 = vunpack.c.l.b16 %v151
    %v929 = vunpack.c.l.b16 %v152
    %v930 = vunpack.c.l.b16 %v153
    %v931 = vunpack.c.l.b16 %v154
    %v932 = vunpack.c.l.b16 %v155
    %v933 = vunpack.c.l.b16 %v156
    %v934 = vunpack.c.l.b16 %v157
    %v935 = vunpack.c.l.b16 %v158
    %v936 = vunpack.c.l.b16 %v159
    %v937 = vunpack.c.l.b16 %v160
    %v938 = vpack.c.b16 %v907, %v906
    %v939 = vpack.c.b16 %v909, %v908
    %v940 = vpack.c.b16 %v911, %v910
    %v941 = vpack.c.b16 %v913, %v912
    %v942 = vpack.c.b16 %v915, %v914
    %v943 = vpack.c.b16 %v917, %v916
    %v944 = vpack.c.b16 %v919, %v918
    %v945 = vpack.c.b16 %v921, %v920
    %v946 = vpack.c.b16 %v923, %v922
    %v947 = vpack.c.b16 %v925, %v924
    %v948 = vpack.c.b16 %v927, %v926
    %v949 = vpack.c.b16 %v929, %v928
    %v950 = vpack.c.b16 %v931, %v930
    %v951 = vpack.c.b16 %v933, %v932
    %v952 = vpack.c.b16 %v935, %v934
    %v953 = vpack.c.b16 %v937, %v936
    %970 = vmatprep.subr.bf16.mxu0 0
    %971 = vmatpush1.bf16.msra.mxu0 %v945
    %972 = vmatprep.subr.bf16.mxu0 0
    %973 = vmatpush1.bf16.msra.mxu0 %v944
    %974 = vmatprep.subr.bf16.mxu0 0
    %975 = vmatpush1.bf16.msra.mxu0 %v943
    %976 = vmatprep.subr.bf16.mxu0 0
    %977 = vmatpush1.bf16.msra.mxu0 %v942
    %978 = vmatprep.subr.bf16.mxu0 0
    %979 = vmatpush1.bf16.msra.mxu0 %v941
    %980 = vmatprep.subr.bf16.mxu0 0
    %981 = vmatpush1.bf16.msra.mxu0 %v940
    %982 = vmatprep.subr.bf16.mxu0 0
    %983 = vmatpush1.bf16.msra.mxu0 %v939
    %984 = vmatprep.subr.bf16.mxu0 0
    %985 = vmatpush1.bf16.msra.mxu0 %v938
    %986 = vmatprep.subr.bf16.mxu0 0
    %987 = vmatpush2.bf16.msra.mxu0 %v953
    %988 = vmatprep.subr.bf16.mxu0 0
    %989 = vmatpush2.bf16.msra.mxu0 %v952
    %990 = vmatprep.subr.bf16.mxu0 0
    %991 = vmatpush2.bf16.msra.mxu0 %v951
    %992 = vmatprep.subr.bf16.mxu0 0
    %993 = vmatpush2.bf16.msra.mxu0 %v950
    %994 = vmatprep.subr.bf16.mxu0 0
    %995 = vmatpush2.bf16.msra.mxu0 %v949
    %996 = vmatprep.subr.bf16.mxu0 0
    %997 = vmatpush2.bf16.msra.mxu0 %v948
    %998 = vmatprep.subr.bf16.mxu0 0
    %999 = vmatpush2.bf16.msra.mxu0 %v947
    %1000 = vmatprep.subr.bf16.mxu0 0
    %1001 = vmatpush2.bf16.msra.mxu0 %v946
    %1002 = vmatprep.mubr.bf16.mxu0 %v128
    %1003 = vmatmul.mubr.bf16.gmra.mxu0 %v127
    %v1004 = vpop.f32.mrf.mxu0
    %v1005 = vadd.f32 %v869, %v1004
    %v1006 = vpop.f32.mrf.mxu0
    %v1007 = vpop.f32.mrf.mxu0
    %v1008 = vpop.f32.mrf.mxu0
    %1009 = vdwg.mxu0
    %1010 = vset.pattern.permute.xlu0 4
    %1011 = vperm.xlu0 %1010, %v114
    %v1012 = vpop.permute.xlu0 %1011
    %vm1013 = vcmp.eq.s32.totalorder %v116, %v1012
    %vm1014 = vcmp.eq.s32.totalorder %v117, %v1012
    %vm1015 = vcmp.eq.s32.totalorder %v161, %v1012
    %vm1016 = vcmp.eq.s32.totalorder %v162, %v1012
    %vm1017 = vcmp.eq.s32.totalorder %v163, %v1012
    %vm1018 = vcmp.eq.s32.totalorder %v164, %v1012
    %vm1019 = vcmp.eq.s32.totalorder %v165, %v1012
    %vm1020 = vcmp.eq.s32.totalorder %v166, %v1012
    %v1021 = vsel %vm1013, 1, 0
    %v1022 = vsel %vm1014, 1, 0
    %v1023 = vsel %vm1015, 1, 0
    %v1024 = vsel %vm1016, 1, 0
    %v1025 = vsel %vm1017, 1, 0
    %v1026 = vsel %vm1018, 1, 0
    %v1027 = vsel %vm1019, 1, 0
    %v1028 = vsel %vm1020, 1, 0
    %v1029 = vcvt.s32.f32 %v1021
    %v1030 = vcvt.s32.f32 %v1022
    %v1031 = vcvt.s32.f32 %v1023
    %v1032 = vcvt.s32.f32 %v1024
    %v1033 = vcvt.s32.f32 %v1025
    %v1034 = vcvt.s32.f32 %v1026
    %v1035 = vcvt.s32.f32 %v1027
    %v1036 = vcvt.s32.f32 %v1028
    %v1037 = vpack.c.bf16 %v1029, %v1029
    %v1038 = vpack.c.bf16 %v1030, %v1030
    %v1039 = vpack.c.bf16 %v1031, %v1031
    %v1040 = vpack.c.bf16 %v1032, %v1032
    %v1041 = vpack.c.bf16 %v1033, %v1033
    %v1042 = vpack.c.bf16 %v1034, %v1034
    %v1043 = vpack.c.bf16 %v1035, %v1035
    %v1044 = vpack.c.bf16 %v1036, %v1036
    %v1045 = vld [vmem:[#allocation8] sm:$0xf]
    %v1046 = vld [vmem:[#allocation8 + $0x4] sm:$0xf]
    %v1047 = vld [vmem:[#allocation8 + $0x8] sm:$0xf]
    %v1048 = vld [vmem:[#allocation8 + $0xc] sm:$0xf]
    %v1049 = vld [vmem:[#allocation8 + $0x10] sm:$0xf]
    %v1050 = vld [vmem:[#allocation8 + $0x14] sm:$0xf]
    %v1051 = vld [vmem:[#allocation8 + $0x18] sm:$0xf]
    %v1052 = vld [vmem:[#allocation8 + $0x1c] sm:$0xf]
    %v1053 = vld [vmem:[#allocation8 + $0x20] sm:$0xf]
    %v1054 = vld [vmem:[#allocation8 + $0x24] sm:$0xf]
    %v1055 = vld [vmem:[#allocation8 + $0x28] sm:$0xf]
    %v1056 = vld [vmem:[#allocation8 + $0x2c] sm:$0xf]
    %v1057 = vld [vmem:[#allocation8 + $0x30] sm:$0xf]
    %v1058 = vld [vmem:[#allocation8 + $0x34] sm:$0xf]
    %v1059 = vld [vmem:[#allocation8 + $0x38] sm:$0xf]
    %v1060 = vld [vmem:[#allocation8 + $0x3c] sm:$0xf]
    %v1061 = vld [vmem:[#allocation8 + $0x40] sm:$0xf]
    %v1062 = vld [vmem:[#allocation8 + $0x44] sm:$0xf]
    %v1063 = vld [vmem:[#allocation8 + $0x48] sm:$0xf]
    %v1064 = vld [vmem:[#allocation8 + $0x4c] sm:$0xf]
    %v1065 = vld [vmem:[#allocation8 + $0x50] sm:$0xf]
    %v1066 = vld [vmem:[#allocation8 + $0x54] sm:$0xf]
    %v1067 = vld [vmem:[#allocation8 + $0x58] sm:$0xf]
    %v1068 = vld [vmem:[#allocation8 + $0x5c] sm:$0xf]
    %v1069 = vld [vmem:[#allocation8 + $0x60] sm:$0xf]
    %v1070 = vld [vmem:[#allocation8 + $0x64] sm:$0xf]
    %v1071 = vld [vmem:[#allocation8 + $0x68] sm:$0xf]
    %v1072 = vld [vmem:[#allocation8 + $0x6c] sm:$0xf]
    %v1073 = vld [vmem:[#allocation8 + $0x70] sm:$0xf]
    %v1074 = vld [vmem:[#allocation8 + $0x74] sm:$0xf]
    %v1075 = vld [vmem:[#allocation8 + $0x78] sm:$0xf]
    %v1076 = vld [vmem:[#allocation8 + $0x7c] sm:$0xf]
    %v1077 = vld [vmem:[#allocation8 + $0x80] sm:$0xf]
    %v1078 = vld [vmem:[#allocation8 + $0x84] sm:$0xf]
    %v1079 = vld [vmem:[#allocation8 + $0x88] sm:$0xf]
    %v1080 = vld [vmem:[#allocation8 + $0x8c] sm:$0xf]
    %v1081 = vld [vmem:[#allocation8 + $0x90] sm:$0xf]
    %v1082 = vld [vmem:[#allocation8 + $0x94] sm:$0xf]
    %v1083 = vld [vmem:[#allocation8 + $0x98] sm:$0xf]
    %v1084 = vld [vmem:[#allocation8 + $0x9c] sm:$0xf]
    %v1085 = vld [vmem:[#allocation8 + $0xa0] sm:$0xf]
    %v1086 = vld [vmem:[#allocation8 + $0xa4] sm:$0xf]
    %v1087 = vld [vmem:[#allocation8 + $0xa8] sm:$0xf]
    %v1088 = vld [vmem:[#allocation8 + $0xac] sm:$0xf]
    %v1089 = vld [vmem:[#allocation8 + $0xb0] sm:$0xf]
    %v1090 = vld [vmem:[#allocation8 + $0xb4] sm:$0xf]
    %v1091 = vld [vmem:[#allocation8 + $0xb8] sm:$0xf]
    %v1092 = vld [vmem:[#allocation8 + $0xbc] sm:$0xf]
    %v1093 = vld [vmem:[#allocation8 + $0xc0] sm:$0xf]
    %v1094 = vld [vmem:[#allocation8 + $0xc4] sm:$0xf]
    %v1095 = vld [vmem:[#allocation8 + $0xc8] sm:$0xf]
    %v1096 = vld [vmem:[#allocation8 + $0xcc] sm:$0xf]
    %v1097 = vld [vmem:[#allocation8 + $0xd0] sm:$0xf]
    %v1098 = vld [vmem:[#allocation8 + $0xd4] sm:$0xf]
    %v1099 = vld [vmem:[#allocation8 + $0xd8] sm:$0xf]
    %v1100 = vld [vmem:[#allocation8 + $0xdc] sm:$0xf]
    %v1101 = vld [vmem:[#allocation8 + $0xe0] sm:$0xf]
    %v1102 = vld [vmem:[#allocation8 + $0xe4] sm:$0xf]
    %v1103 = vld [vmem:[#allocation8 + $0xe8] sm:$0xf]
    %v1104 = vld [vmem:[#allocation8 + $0xec] sm:$0xf]
    %v1105 = vld [vmem:[#allocation8 + $0xf0] sm:$0xf]
    %v1106 = vld [vmem:[#allocation8 + $0xf4] sm:$0xf]
    %v1107 = vld [vmem:[#allocation8 + $0xf8] sm:$0xf]
    %v1108 = vld [vmem:[#allocation8 + $0xfc] sm:$0xf]
    %v1109 = vld [vmem:[#allocation8 + $0x100] sm:$0xf]
    %v1110 = vld [vmem:[#allocation8 + $0x104] sm:$0xf]
    %v1111 = vld [vmem:[#allocation8 + $0x108] sm:$0xf]
    %v1112 = vld [vmem:[#allocation8 + $0x10c] sm:$0xf]
    %v1113 = vld [vmem:[#allocation8 + $0x110] sm:$0xf]
    %v1114 = vld [vmem:[#allocation8 + $0x114] sm:$0xf]
    %v1115 = vld [vmem:[#allocation8 + $0x118] sm:$0xf]
    %v1116 = vld [vmem:[#allocation8 + $0x11c] sm:$0xf]
    %v1117 = vld [vmem:[#allocation8 + $0x120] sm:$0xf]
    %v1118 = vld [vmem:[#allocation8 + $0x124] sm:$0xf]
    %v1119 = vld [vmem:[#allocation8 + $0x128] sm:$0xf]
    %v1120 = vld [vmem:[#allocation8 + $0x12c] sm:$0xf]
    %v1121 = vld [vmem:[#allocation8 + $0x130] sm:$0xf]
    %v1122 = vld [vmem:[#allocation8 + $0x134] sm:$0xf]
    %v1123 = vld [vmem:[#allocation8 + $0x138] sm:$0xf]
    %v1124 = vld [vmem:[#allocation8 + $0x13c] sm:$0xf]
    %v1125 = vld [vmem:[#allocation8 + $0x140] sm:$0xf]
    %v1126 = vld [vmem:[#allocation8 + $0x144] sm:$0xf]
    %v1127 = vld [vmem:[#allocation8 + $0x148] sm:$0xf]
    %v1128 = vld [vmem:[#allocation8 + $0x14c] sm:$0xf]
    %v1129 = vld [vmem:[#allocation8 + $0x150] sm:$0xf]
    %v1130 = vld [vmem:[#allocation8 + $0x154] sm:$0xf]
    %v1131 = vld [vmem:[#allocation8 + $0x158] sm:$0xf]
    %v1132 = vld [vmem:[#allocation8 + $0x15c] sm:$0xf]
    %v1133 = vld [vmem:[#allocation8 + $0x160] sm:$0xf]
    %v1134 = vld [vmem:[#allocation8 + $0x164] sm:$0xf]
    %v1135 = vld [vmem:[#allocation8 + $0x168] sm:$0xf]
    %v1136 = vld [vmem:[#allocation8 + $0x16c] sm:$0xf]
    %v1137 = vld [vmem:[#allocation8 + $0x170] sm:$0xf]
    %v1138 = vld [vmem:[#allocation8 + $0x174] sm:$0xf]
    %v1139 = vld [vmem:[#allocation8 + $0x178] sm:$0xf]
    %v1140 = vld [vmem:[#allocation8 + $0x17c] sm:$0xf]
    %v1141 = vld [vmem:[#allocation8 + $0x180] sm:$0xf]
    %v1142 = vld [vmem:[#allocation8 + $0x184] sm:$0xf]
    %v1143 = vld [vmem:[#allocation8 + $0x188] sm:$0xf]
    %v1144 = vld [vmem:[#allocation8 + $0x18c] sm:$0xf]
    %v1145 = vld [vmem:[#allocation8 + $0x190] sm:$0xf]
    %v1146 = vld [vmem:[#allocation8 + $0x194] sm:$0xf]
    %v1147 = vld [vmem:[#allocation8 + $0x198] sm:$0xf]
    %v1148 = vld [vmem:[#allocation8 + $0x19c] sm:$0xf]
    %v1149 = vld [vmem:[#allocation8 + $0x1a0] sm:$0xf]
    %v1150 = vld [vmem:[#allocation8 + $0x1a4] sm:$0xf]
    %v1151 = vld [vmem:[#allocation8 + $0x1a8] sm:$0xf]
    %v1152 = vld [vmem:[#allocation8 + $0x1ac] sm:$0xf]
    %v1153 = vld [vmem:[#allocation8 + $0x1b0] sm:$0xf]
    %v1154 = vld [vmem:[#allocation8 + $0x1b4] sm:$0xf]
    %v1155 = vld [vmem:[#allocation8 + $0x1b8] sm:$0xf]
    %v1156 = vld [vmem:[#allocation8 + $0x1bc] sm:$0xf]
    %v1157 = vld [vmem:[#allocation8 + $0x1c0] sm:$0xf]
    %v1158 = vld [vmem:[#allocation8 + $0x1c4] sm:$0xf]
    %v1159 = vld [vmem:[#allocation8 + $0x1c8] sm:$0xf]
    %v1160 = vld [vmem:[#allocation8 + $0x1cc] sm:$0xf]
    %v1161 = vld [vmem:[#allocation8 + $0x1d0] sm:$0xf]
    %v1162 = vld [vmem:[#allocation8 + $0x1d4] sm:$0xf]
    %v1163 = vld [vmem:[#allocation8 + $0x1d8] sm:$0xf]
    %v1164 = vld [vmem:[#allocation8 + $0x1dc] sm:$0xf]
    %v1165 = vld [vmem:[#allocation8 + $0x1e0] sm:$0xf]
    %v1166 = vld [vmem:[#allocation8 + $0x1e4] sm:$0xf]
    %v1167 = vld [vmem:[#allocation8 + $0x1e8] sm:$0xf]
    %v1168 = vld [vmem:[#allocation8 + $0x1ec] sm:$0xf]
    %v1169 = vld [vmem:[#allocation8 + $0x1f0] sm:$0xf]
    %v1170 = vld [vmem:[#allocation8 + $0x1f4] sm:$0xf]
    %v1171 = vld [vmem:[#allocation8 + $0x1f8] sm:$0xf]
    %v1172 = vld [vmem:[#allocation8 + $0x1fc] sm:$0xf]
    %v1301 = vunpack.c.l.b16 %v1045
    %v1302 = vunpack.c.l.b16 %v1046
    %v1303 = vunpack.c.l.b16 %v1047
    %v1304 = vunpack.c.l.b16 %v1048
    %v1305 = vunpack.c.l.b16 %v1049
    %v1306 = vunpack.c.l.b16 %v1050
    %v1307 = vunpack.c.l.b16 %v1051
    %v1308 = vunpack.c.l.b16 %v1052
    %v1309 = vunpack.c.l.b16 %v1053
    %v1310 = vunpack.c.l.b16 %v1054
    %v1311 = vunpack.c.l.b16 %v1055
    %v1312 = vunpack.c.l.b16 %v1056
    %v1313 = vunpack.c.l.b16 %v1057
    %v1314 = vunpack.c.l.b16 %v1058
    %v1315 = vunpack.c.l.b16 %v1059
    %v1316 = vunpack.c.l.b16 %v1060
    %v1317 = vunpack.c.l.b16 %v1061
    %v1318 = vunpack.c.l.b16 %v1062
    %v1319 = vunpack.c.l.b16 %v1063
    %v1320 = vunpack.c.l.b16 %v1064
    %v1321 = vunpack.c.l.b16 %v1065
    %v1322 = vunpack.c.l.b16 %v1066
    %v1323 = vunpack.c.l.b16 %v1067
    %v1324 = vunpack.c.l.b16 %v1068
    %v1325 = vunpack.c.l.b16 %v1069
    %v1326 = vunpack.c.l.b16 %v1070
    %v1327 = vunpack.c.l.b16 %v1071
    %v1328 = vunpack.c.l.b16 %v1072
    %v1329 = vunpack.c.l.b16 %v1073
    %v1330 = vunpack.c.l.b16 %v1074
    %v1331 = vunpack.c.l.b16 %v1075
    %v1332 = vunpack.c.l.b16 %v1076
    %v1333 = vunpack.c.l.b16 %v1077
    %v1334 = vunpack.c.l.b16 %v1078
    %v1335 = vunpack.c.l.b16 %v1079
    %v1336 = vunpack.c.l.b16 %v1080
    %v1337 = vunpack.c.l.b16 %v1081
    %v1338 = vunpack.c.l.b16 %v1082
    %v1339 = vunpack.c.l.b16 %v1083
    %v1340 = vunpack.c.l.b16 %v1084
    %v1341 = vunpack.c.l.b16 %v1085
    %v1342 = vunpack.c.l.b16 %v1086
    %v1343 = vunpack.c.l.b16 %v1087
    %v1344 = vunpack.c.l.b16 %v1088
    %v1345 = vunpack.c.l.b16 %v1089
    %v1346 = vunpack.c.l.b16 %v1090
    %v1347 = vunpack.c.l.b16 %v1091
    %v1348 = vunpack.c.l.b16 %v1092
    %v1349 = vunpack.c.l.b16 %v1093
    %v1350 = vunpack.c.l.b16 %v1094
    %v1351 = vunpack.c.l.b16 %v1095
    %v1352 = vunpack.c.l.b16 %v1096
    %v1353 = vunpack.c.l.b16 %v1097
    %v1354 = vunpack.c.l.b16 %v1098
    %v1355 = vunpack.c.l.b16 %v1099
    %v1356 = vunpack.c.l.b16 %v1100
    %v1357 = vunpack.c.l.b16 %v1101
    %v1358 = vunpack.c.l.b16 %v1102
    %v1359 = vunpack.c.l.b16 %v1103
    %v1360 = vunpack.c.l.b16 %v1104
    %v1361 = vunpack.c.l.b16 %v1105
    %v1362 = vunpack.c.l.b16 %v1106
    %v1363 = vunpack.c.l.b16 %v1107
    %v1364 = vunpack.c.l.b16 %v1108
    %v1365 = vunpack.c.l.b16 %v1109
    %v1366 = vunpack.c.l.b16 %v1110
    %v1367 = vunpack.c.l.b16 %v1111
    %v1368 = vunpack.c.l.b16 %v1112
    %v1369 = vunpack.c.l.b16 %v1113
    %v1370 = vunpack.c.l.b16 %v1114
    %v1371 = vunpack.c.l.b16 %v1115
    %v1372 = vunpack.c.l.b16 %v1116
    %v1373 = vunpack.c.l.b16 %v1117
    %v1374 = vunpack.c.l.b16 %v1118
    %v1375 = vunpack.c.l.b16 %v1119
    %v1376 = vunpack.c.l.b16 %v1120
    %v1377 = vunpack.c.l.b16 %v1121
    %v1378 = vunpack.c.l.b16 %v1122
    %v1379 = vunpack.c.l.b16 %v1123
    %v1380 = vunpack.c.l.b16 %v1124
    %v1381 = vunpack.c.l.b16 %v1125
    %v1382 = vunpack.c.l.b16 %v1126
    %v1383 = vunpack.c.l.b16 %v1127
    %v1384 = vunpack.c.l.b16 %v1128
    %v1385 = vunpack.c.l.b16 %v1129
    %v1386 = vunpack.c.l.b16 %v1130
    %v1387 = vunpack.c.l.b16 %v1131
    %v1388 = vunpack.c.l.b16 %v1132
    %v1389 = vunpack.c.l.b16 %v1133
    %v1390 = vunpack.c.l.b16 %v1134
    %v1391 = vunpack.c.l.b16 %v1135
    %v1392 = vunpack.c.l.b16 %v1136
    %v1393 = vunpack.c.l.b16 %v1137
    %v1394 = vunpack.c.l.b16 %v1138
    %v1395 = vunpack.c.l.b16 %v1139
    %v1396 = vunpack.c.l.b16 %v1140
    %v1397 = vunpack.c.l.b16 %v1141
    %v1398 = vunpack.c.l.b16 %v1142
    %v1399 = vunpack.c.l.b16 %v1143
    %v1400 = vunpack.c.l.b16 %v1144
    %v1401 = vunpack.c.l.b16 %v1145
    %v1402 = vunpack.c.l.b16 %v1146
    %v1403 = vunpack.c.l.b16 %v1147
    %v1404 = vunpack.c.l.b16 %v1148
    %v1405 = vunpack.c.l.b16 %v1149
    %v1406 = vunpack.c.l.b16 %v1150
    %v1407 = vunpack.c.l.b16 %v1151
    %v1408 = vunpack.c.l.b16 %v1152
    %v1409 = vunpack.c.l.b16 %v1153
    %v1410 = vunpack.c.l.b16 %v1154
    %v1411 = vunpack.c.l.b16 %v1155
    %v1412 = vunpack.c.l.b16 %v1156
    %v1413 = vunpack.c.l.b16 %v1157
    %v1414 = vunpack.c.l.b16 %v1158
    %v1415 = vunpack.c.l.b16 %v1159
    %v1416 = vunpack.c.l.b16 %v1160
    %v1417 = vunpack.c.l.b16 %v1161
    %v1418 = vunpack.c.l.b16 %v1162
    %v1419 = vunpack.c.l.b16 %v1163
    %v1420 = vunpack.c.l.b16 %v1164
    %v1421 = vunpack.c.l.b16 %v1165
    %v1422 = vunpack.c.l.b16 %v1166
    %v1423 = vunpack.c.l.b16 %v1167
    %v1424 = vunpack.c.l.b16 %v1168
    %v1425 = vunpack.c.l.b16 %v1169
    %v1426 = vunpack.c.l.b16 %v1170
    %v1427 = vunpack.c.l.b16 %v1171
    %v1428 = vunpack.c.l.b16 %v1172
    %v1429 = vpack.c.b16 %v1302, %v1301
    %v1430 = vpack.c.b16 %v1304, %v1303
    %v1431 = vpack.c.b16 %v1306, %v1305
    %v1432 = vpack.c.b16 %v1308, %v1307
    %v1433 = vpack.c.b16 %v1310, %v1309
    %v1434 = vpack.c.b16 %v1312, %v1311
    %v1435 = vpack.c.b16 %v1314, %v1313
    %v1436 = vpack.c.b16 %v1316, %v1315
    %v1437 = vpack.c.b16 %v1318, %v1317
    %v1438 = vpack.c.b16 %v1320, %v1319
    %v1439 = vpack.c.b16 %v1322, %v1321
    %v1440 = vpack.c.b16 %v1324, %v1323
    %v1441 = vpack.c.b16 %v1326, %v1325
    %v1442 = vpack.c.b16 %v1328, %v1327
    %v1443 = vpack.c.b16 %v1330, %v1329
    %v1444 = vpack.c.b16 %v1332, %v1331
    %v1445 = vpack.c.b16 %v1334, %v1333
    %v1446 = vpack.c.b16 %v1336, %v1335
    %v1447 = vpack.c.b16 %v1338, %v1337
    %v1448 = vpack.c.b16 %v1340, %v1339
    %v1449 = vpack.c.b16 %v1342, %v1341
    %v1450 = vpack.c.b16 %v1344, %v1343
    %v1451 = vpack.c.b16 %v1346, %v1345
    %v1452 = vpack.c.b16 %v1348, %v1347
    %v1453 = vpack.c.b16 %v1350, %v1349
    %v1454 = vpack.c.b16 %v1352, %v1351
    %v1455 = vpack.c.b16 %v1354, %v1353
    %v1456 = vpack.c.b16 %v1356, %v1355
    %v1457 = vpack.c.b16 %v1358, %v1357
    %v1458 = vpack.c.b16 %v1360, %v1359
    %v1459 = vpack.c.b16 %v1362, %v1361
    %v1460 = vpack.c.b16 %v1364, %v1363
    %v1461 = vpack.c.b16 %v1366, %v1365
    %v1462 = vpack.c.b16 %v1368, %v1367
    %v1463 = vpack.c.b16 %v1370, %v1369
    %v1464 = vpack.c.b16 %v1372, %v1371
    %v1465 = vpack.c.b16 %v1374, %v1373
    %v1466 = vpack.c.b16 %v1376, %v1375
    %v1467 = vpack.c.b16 %v1378, %v1377
    %v1468 = vpack.c.b16 %v1380, %v1379
    %v1469 = vpack.c.b16 %v1382, %v1381
    %v1470 = vpack.c.b16 %v1384, %v1383
    %v1471 = vpack.c.b16 %v1386, %v1385
    %v1472 = vpack.c.b16 %v1388, %v1387
    %v1473 = vpack.c.b16 %v1390, %v1389
    %v1474 = vpack.c.b16 %v1392, %v1391
    %v1475 = vpack.c.b16 %v1394, %v1393
    %v1476 = vpack.c.b16 %v1396, %v1395
    %v1477 = vpack.c.b16 %v1398, %v1397
    %v1478 = vpack.c.b16 %v1400, %v1399
    %v1479 = vpack.c.b16 %v1402, %v1401
    %v1480 = vpack.c.b16 %v1404, %v1403
    %v1481 = vpack.c.b16 %v1406, %v1405
    %v1482 = vpack.c.b16 %v1408, %v1407
    %v1483 = vpack.c.b16 %v1410, %v1409
    %v1484 = vpack.c.b16 %v1412, %v1411
    %v1485 = vpack.c.b16 %v1414, %v1413
    %v1486 = vpack.c.b16 %v1416, %v1415
    %v1487 = vpack.c.b16 %v1418, %v1417
    %v1488 = vpack.c.b16 %v1420, %v1419
    %v1489 = vpack.c.b16 %v1422, %v1421
    %v1490 = vpack.c.b16 %v1424, %v1423
    %v1491 = vpack.c.b16 %v1426, %v1425
    %v1492 = vpack.c.b16 %v1428, %v1427
    %1557 = vmatprep.subr.bf16.mxu0 0
    %1558 = vmatpush1.bf16.msra.mxu0 %v1436
    %1559 = vmatprep.subr.bf16.mxu0 0
    %1560 = vmatpush1.bf16.msra.mxu0 %v1435
    %1561 = vmatprep.subr.bf16.mxu0 0
    %1562 = vmatpush1.bf16.msra.mxu0 %v1434
    %1563 = vmatprep.subr.bf16.mxu0 0
    %1564 = vmatpush1.bf16.msra.mxu0 %v1433
    %1565 = vmatprep.subr.bf16.mxu0 0
    %1566 = vmatpush1.bf16.msra.mxu0 %v1432
    %1567 = vmatprep.subr.bf16.mxu0 0
    %1568 = vmatpush1.bf16.msra.mxu0 %v1431
    %1569 = vmatprep.subr.bf16.mxu0 0
    %1570 = vmatpush1.bf16.msra.mxu0 %v1430
    %1571 = vmatprep.subr.bf16.mxu0 0
    %1572 = vmatpush1.bf16.msra.mxu0 %v1429
    %1573 = vmatprep.subr.bf16.mxu0 0
    %1574 = vmatpush2.bf16.msra.mxu0 %v1444
    %1575 = vmatprep.subr.bf16.mxu0 0
    %1576 = vmatpush2.bf16.msra.mxu0 %v1443
    %1577 = vmatprep.subr.bf16.mxu0 0
    %1578 = vmatpush2.bf16.msra.mxu0 %v1442
    %1579 = vmatprep.subr.bf16.mxu0 0
    %1580 = vmatpush2.bf16.msra.mxu0 %v1441
    %1581 = vmatprep.subr.bf16.mxu0 0
    %1582 = vmatpush2.bf16.msra.mxu0 %v1440
    %1583 = vmatprep.subr.bf16.mxu0 0
    %1584 = vmatpush2.bf16.msra.mxu0 %v1439
    %1585 = vmatprep.subr.bf16.mxu0 0
    %1586 = vmatpush2.bf16.msra.mxu0 %v1438
    %1587 = vmatprep.subr.bf16.mxu0 0
    %1588 = vmatpush2.bf16.msra.mxu0 %v1437
    %1589 = vmatprep.mubr.bf16.mxu0 %v1038
    %1590 = vmatmul.mubr.bf16.gmra.mxu0 %v1037
    %v1591 = vpop.f32.mrf.mxu0
    %v1592 = vadd.f32 0.0, %v1591
    %v1593 = vpop.f32.mrf.mxu0
    %v1594 = vpop.f32.mrf.mxu0
    %v1595 = vpop.f32.mrf.mxu0
    %1596 = vdwg.mxu0
    %1597 = vmatprep.subr.bf16.mxu0 0
    %1598 = vmatpush1.bf16.msra.mxu0 %v1452
    %1599 = vmatprep.subr.bf16.mxu0 0
    %1600 = vmatpush1.bf16.msra.mxu0 %v1451
    %1601 = vmatprep.subr.bf16.mxu0 0
    %1602 = vmatpush1.bf16.msra.mxu0 %v1450
    %1603 = vmatprep.subr.bf16.mxu0 0
    %1604 = vmatpush1.bf16.msra.mxu0 %v1449
    %1605 = vmatprep.subr.bf16.mxu0 0
    %1606 = vmatpush1.bf16.msra.mxu0 %v1448
    %1607 = vmatprep.subr.bf16.mxu0 0
    %1608 = vmatpush1.bf16.msra.mxu0 %v1447
    %1609 = vmatprep.subr.bf16.mxu0 0
    %1610 = vmatpush1.bf16.msra.mxu0 %v1446
    %1611 = vmatprep.subr.bf16.mxu0 0
    %1612 = vmatpush1.bf16.msra.mxu0 %v1445
    %1613 = vmatprep.subr.bf16.mxu0 0
    %1614 = vmatpush2.bf16.msra.mxu0 %v1460
    %1615 = vmatprep.subr.bf16.mxu0 0
    %1616 = vmatpush2.bf16.msra.mxu0 %v1459
    %1617 = vmatprep.subr.bf16.mxu0 0
    %1618 = vmatpush2.bf16.msra.mxu0 %v1458
    %1619 = vmatprep.subr.bf16.mxu0 0
    %1620 = vmatpush2.bf16.msra.mxu0 %v1457
    %1621 = vmatprep.subr.bf16.mxu0 0
    %1622 = vmatpush2.bf16.msra.mxu0 %v1456
    %1623 = vmatprep.subr.bf16.mxu0 0
    %1624 = vmatpush2.bf16.msra.mxu0 %v1455
    %1625 = vmatprep.subr.bf16.mxu0 0
    %1626 = vmatpush2.bf16.msra.mxu0 %v1454
    %1627 = vmatprep.subr.bf16.mxu0 0
    %1628 = vmatpush2.bf16.msra.mxu0 %v1453
    %1629 = vmatprep.mubr.bf16.mxu0 %v1040
    %1630 = vmatmul.mubr.bf16.gmra.mxu0 %v1039
    %v1631 = vpop.f32.mrf.mxu0
    %v1632 = vadd.f32 %v1592, %v1631
    %v1633 = vpop.f32.mrf.mxu0
    %v1634 = vpop.f32.mrf.mxu0
    %v1635 = vpop.f32.mrf.mxu0
    %1636 = vdwg.mxu0
    %1637 = vmatprep.subr.bf16.mxu0 0
    %1638 = vmatpush1.bf16.msra.mxu0 %v1468
    %1639 = vmatprep.subr.bf16.mxu0 0
    %1640 = vmatpush1.bf16.msra.mxu0 %v1467
    %1641 = vmatprep.subr.bf16.mxu0 0
    %1642 = vmatpush1.bf16.msra.mxu0 %v1466
    %1643 = vmatprep.subr.bf16.mxu0 0
    %1644 = vmatpush1.bf16.msra.mxu0 %v1465
    %1645 = vmatprep.subr.bf16.mxu0 0
    %1646 = vmatpush1.bf16.msra.mxu0 %v1464
    %1647 = vmatprep.subr.bf16.mxu0 0
    %1648 = vmatpush1.bf16.msra.mxu0 %v1463
    %1649 = vmatprep.subr.bf16.mxu0 0
    %1650 = vmatpush1.bf16.msra.mxu0 %v1462
    %1651 = vmatprep.subr.bf16.mxu0 0
    %1652 = vmatpush1.bf16.msra.mxu0 %v1461
    %1653 = vmatprep.subr.bf16.mxu0 0
    %1654 = vmatpush2.bf16.msra.mxu0 %v1476
    %1655 = vmatprep.subr.bf16.mxu0 0
    %1656 = vmatpush2.bf16.msra.mxu0 %v1475
    %1657 = vmatprep.subr.bf16.mxu0 0
    %1658 = vmatpush2.bf16.msra.mxu0 %v1474
    %1659 = vmatprep.subr.bf16.mxu0 0
    %1660 = vmatpush2.bf16.msra.mxu0 %v1473
    %1661 = vmatprep.subr.bf16.mxu0 0
    %1662 = vmatpush2.bf16.msra.mxu0 %v1472
    %1663 = vmatprep.subr.bf16.mxu0 0
    %1664 = vmatpush2.bf16.msra.mxu0 %v1471
    %1665 = vmatprep.subr.bf16.mxu0 0
    %1666 = vmatpush2.bf16.msra.mxu0 %v1470
    %1667 = vmatprep.subr.bf16.mxu0 0
    %1668 = vmatpush2.bf16.msra.mxu0 %v1469
    %1669 = vmatprep.mubr.bf16.mxu0 %v1042
    %1670 = vmatmul.mubr.bf16.gmra.mxu0 %v1041
    %v1671 = vpop.f32.mrf.mxu0
    %v1672 = vadd.f32 %v1632, %v1671
    %v1673 = vpop.f32.mrf.mxu0
    %v1674 = vpop.f32.mrf.mxu0
    %v1675 = vpop.f32.mrf.mxu0
    %1676 = vdwg.mxu0
    %1677 = vmatprep.subr.bf16.mxu0 0
    %1678 = vmatpush1.bf16.msra.mxu0 %v1484
    %1679 = vmatprep.subr.bf16.mxu0 0
    %1680 = vmatpush1.bf16.msra.mxu0 %v1483
    %1681 = vmatprep.subr.bf16.mxu0 0
    %1682 = vmatpush1.bf16.msra.mxu0 %v1482
    %1683 = vmatprep.subr.bf16.mxu0 0
    %1684 = vmatpush1.bf16.msra.mxu0 %v1481
    %1685 = vmatprep.subr.bf16.mxu0 0
    %1686 = vmatpush1.bf16.msra.mxu0 %v1480
    %1687 = vmatprep.subr.bf16.mxu0 0
    %1688 = vmatpush1.bf16.msra.mxu0 %v1479
    %1689 = vmatprep.subr.bf16.mxu0 0
    %1690 = vmatpush1.bf16.msra.mxu0 %v1478
    %1691 = vmatprep.subr.bf16.mxu0 0
    %1692 = vmatpush1.bf16.msra.mxu0 %v1477
    %1693 = vmatprep.subr.bf16.mxu0 0
    %1694 = vmatpush2.bf16.msra.mxu0 %v1492
    %1695 = vmatprep.subr.bf16.mxu0 0
    %1696 = vmatpush2.bf16.msra.mxu0 %v1491
    %1697 = vmatprep.subr.bf16.mxu0 0
    %1698 = vmatpush2.bf16.msra.mxu0 %v1490
    %1699 = vmatprep.subr.bf16.mxu0 0
    %1700 = vmatpush2.bf16.msra.mxu0 %v1489
    %1701 = vmatprep.subr.bf16.mxu0 0
    %1702 = vmatpush2.bf16.msra.mxu0 %v1488
    %1703 = vmatprep.subr.bf16.mxu0 0
    %1704 = vmatpush2.bf16.msra.mxu0 %v1487
    %1705 = vmatprep.subr.bf16.mxu0 0
    %1706 = vmatpush2.bf16.msra.mxu0 %v1486
    %1707 = vmatprep.subr.bf16.mxu0 0
    %1708 = vmatpush2.bf16.msra.mxu0 %v1485
    %1709 = vmatprep.mubr.bf16.mxu0 %v1044
    %1710 = vmatmul.mubr.bf16.gmra.mxu0 %v1043
    %v1711 = vpop.f32.mrf.mxu0
    %v1712 = vadd.f32 %v1672, %v1711
    %v1713 = vpop.f32.mrf.mxu0
    %v1714 = vpop.f32.mrf.mxu0
    %v1715 = vpop.f32.mrf.mxu0
    %1716 = vdwg.mxu0
    %v1717 = vadd.f32 %v1005, %v1712
    %v1718 = vld [vmem:[%s5 + $0x2] sm:$0x1]
    %v1719 = vlaneseq
    %v1720 = vshrl.u32 %v1719, 7
    %v1721 = vsub.s32 0, %v1720
    %v1722 = vrot.slane %v1718, %v1721
    %v1723 = vadd.f32 %v1717, %v1722
    %v1724 = vmax.f32 %v1723, 0.0
    %v1725 = vpack.c.bf16 %v1724, %v1724
    %v1726 = vld [vmem:[#allocation10] sm:$0xf]
    %v1727 = vld [vmem:[#allocation10 + $0x4] sm:$0xf]
    %v1728 = vld [vmem:[#allocation10 + $0x8] sm:$0xf]
    %v1729 = vld [vmem:[#allocation10 + $0xc] sm:$0xf]
    %v1730 = vld [vmem:[#allocation10 + $0x10] sm:$0xf]
    %v1731 = vld [vmem:[#allocation10 + $0x14] sm:$0xf]
    %v1732 = vld [vmem:[#allocation10 + $0x18] sm:$0xf]
    %v1733 = vld [vmem:[#allocation10 + $0x1c] sm:$0xf]
    %v1734 = vld [vmem:[#allocation10 + $0x20] sm:$0xf]
    %v1735 = vld [vmem:[#allocation10 + $0x24] sm:$0xf]
    %v1736 = vld [vmem:[#allocation10 + $0x28] sm:$0xf]
    %v1737 = vld [vmem:[#allocation10 + $0x2c] sm:$0xf]
    %v1738 = vld [vmem:[#allocation10 + $0x30] sm:$0xf]
    %v1739 = vld [vmem:[#allocation10 + $0x34] sm:$0xf]
    %v1740 = vld [vmem:[#allocation10 + $0x38] sm:$0xf]
    %v1741 = vld [vmem:[#allocation10 + $0x3c] sm:$0xf]
    %v1758 = vunpack.c.l.b16 %v1726
    %v1759 = vunpack.c.l.b16 %v1727
    %v1760 = vunpack.c.l.b16 %v1728
    %v1761 = vunpack.c.l.b16 %v1729
    %v1762 = vunpack.c.l.b16 %v1730
    %v1763 = vunpack.c.l.b16 %v1731
    %v1764 = vunpack.c.l.b16 %v1732
    %v1765 = vunpack.c.l.b16 %v1733
    %v1766 = vunpack.c.l.b16 %v1734
    %v1767 = vunpack.c.l.b16 %v1735
    %v1768 = vunpack.c.l.b16 %v1736
    %v1769 = vunpack.c.l.b16 %v1737
    %v1770 = vunpack.c.l.b16 %v1738
    %v1771 = vunpack.c.l.b16 %v1739
    %v1772 = vunpack.c.l.b16 %v1740
    %v1773 = vunpack.c.l.b16 %v1741
    %v1774 = vpack.c.b16 %v1759, %v1758
    %v1775 = vpack.c.b16 %v1761, %v1760
    %v1776 = vpack.c.b16 %v1763, %v1762
    %v1777 = vpack.c.b16 %v1765, %v1764
    %v1778 = vpack.c.b16 %v1767, %v1766
    %v1779 = vpack.c.b16 %v1769, %v1768
    %v1780 = vpack.c.b16 %v1771, %v1770
    %v1781 = vpack.c.b16 %v1773, %v1772
    %1790 = vmatprep.subr.bf16.mxu0 0
    %1791 = vmatpush1.bf16.msra.mxu0 %v1781
    %1792 = vmatprep.subr.bf16.mxu0 0
    %1793 = vmatpush1.bf16.msra.mxu0 %v1780
    %1794 = vmatprep.subr.bf16.mxu0 0
    %1795 = vmatpush1.bf16.msra.mxu0 %v1779
    %1796 = vmatprep.subr.bf16.mxu0 0
    %1797 = vmatpush1.bf16.msra.mxu0 %v1778
    %1798 = vmatprep.subr.bf16.mxu0 0
    %1799 = vmatpush1.bf16.msra.mxu0 %v1777
    %1800 = vmatprep.subr.bf16.mxu0 0
    %1801 = vmatpush1.bf16.msra.mxu0 %v1776
    %1802 = vmatprep.subr.bf16.mxu0 0
    %1803 = vmatpush1.bf16.msra.mxu0 %v1775
    %1804 = vmatprep.subr.bf16.mxu0 0
    %1805 = vmatpush1.bf16.msra.mxu0 %v1774
    %1806 = vmatprep.subr.bf16.mxu0 0
    %1807 = vmatpush2.bf16.msra.mxu0 0
    %1808 = vmatprep.subr.bf16.mxu0 0
    %1809 = vmatpush2.bf16.msra.mxu0 0
    %1810 = vmatprep.subr.bf16.mxu0 0
    %1811 = vmatpush2.bf16.msra.mxu0 0
    %1812 = vmatprep.subr.bf16.mxu0 0
    %1813 = vmatpush2.bf16.msra.mxu0 0
    %1814 = vmatprep.subr.bf16.mxu0 0
    %1815 = vmatpush2.bf16.msra.mxu0 0
    %1816 = vmatprep.subr.bf16.mxu0 0
    %1817 = vmatpush2.bf16.msra.mxu0 0
    %1818 = vmatprep.subr.bf16.mxu0 0
    %1819 = vmatpush2.bf16.msra.mxu0 0
    %1820 = vmatprep.subr.bf16.mxu0 0
    %1821 = vmatpush2.bf16.msra.mxu0 0
    %1822 = vmatprep.mubr.bf16.mxu0 0
    %1823 = vmatmul.mubr.bf16.gmra.mxu0 %v1725
    %v1824 = vpop.f32.mrf.mxu0
    %v1825 = vadd.f32 0.0, %v1824
    %v1826 = vpop.f32.mrf.mxu0
    %v1827 = vpop.f32.mrf.mxu0
    %v1828 = vpop.f32.mrf.mxu0
    %1829 = vdwg.mxu0
    %v1830 = vadd.f32 %v113, %v1825
    %v1831 = vld [vmem:[%s5 + $0x3] sm:$0x1]
    %v1832 = vlaneseq
    %v1833 = vshrl.u32 %v1832, 7
    %v1834 = vsub.s32 0, %v1833
    %v1835 = vrot.slane %v1831, %v1834
    %v1836 = vadd.f32 %v1830, %v1835
    %1837 = vst [vmem:[#allocation11] sm:$0xff] %v1836
    // Predicated region
    $region46: #{tpu_custom_call.1} parent=1 // pred_check
      _
    $region47: #{tpu_custom_call.1} parent=1 // pred_check_branch
      %1839 = sbr.rel (0) target = $region49
    $region48: #{tpu_custom_call.1} parent=1 // pred_region
      %s1841 = ssub.s32 128, 128
      %1842 = vsyncadd [#allocation4], %s1841
      %s1844 = sshll.u32 [#allocation11], 4
      %s1845 = int_to_ptr.vmem [resolvable:$true] %s1844
      %1847 = dma.vmem_to_hbm [thread:$0]  %s1845, 128, %s6, [#allocation4]
    $region49: #{tpu_custom_call.1} parent=1 // pred_fallthru
      _
    // Predicated region
    $region50: #{tpu_custom_call.1} parent=1 // pred_check
      _
    $region51: #{tpu_custom_call.1} parent=1 // pred_check_branch
      %1849 = sbr.rel (0) target = $region53
    $region52: #{tpu_custom_call.1} parent=1 // pred_region
      %1850 = dma.done [#allocation4], 128
    $region53: #{tpu_custom_call.1} parent=1 // pred_fallthru
      _
    %1851 = vsyncpa [#allocation3], 1
    %1852 = vsyncpa [#allocation6], 1
    %1853 = vsyncpa [#allocation9], 1
    %1854 = vsyncpa [#allocation4], 1

</llo_original>
